<compile_context>
chip_gen: v5e
topology: v5e:2x2
jax: 0.10.0
libtpu: 0.0.40
codegen_flags: <defaults>
</compile_context>

<pallas_src>
import functools

import jax
import jax.numpy as jnp
from jax import lax
from jax.experimental import pallas as pl
from jax.experimental.pallas import tpu as pltpu


# --------------------------------------------------------------------------
# Pallas kernel: single invocation, whole sequence resident in VMEM.
# G = per-gate lane width (hidden size padded up to a multiple of 128).
# --------------------------------------------------------------------------
def gruc_kernel(x_ref,        # (T*B_pad, D_in)   time-major, batch padded to 8
                w_i_ref,      # (D_in, 3G)        fused input weights  [r|z|n], gate-blocked
                b_i_ref,      # (1, 3G)           fused input bias (r/z include b_hh)
                w_h_ref,      # (G, 3G)           fused hidden weights [r|z|n], gate-blocked
                b_hn_ref,     # (1, G)            hidden bias of the n gate
                w_out_ref,    # (G, C_pad)        Linear head, lane-padded
                b_out_ref,    # (1, C_pad)
                out_ref,      # (B_pad, C_pad)
                xi_ref,       # scratch (T*B_pad, 3G)
                *, T, B_pad, G):
    # ---- Phase 0: all input-side gate projections in one matmul (no h dep).
    xi_ref[...] = (jnp.dot(x_ref[...], w_i_ref[...],
                           preferred_element_type=jnp.float32)
                   + b_i_ref[...])

    w_h = w_h_ref[...]       # hoisted: constant across the time loop
    b_hn = b_hn_ref[...]

    # ---- Recurrence: one fused (B_pad, G) x (G, 3G) matmul + elementwise per
    #      step.  Row offsets t*B_pad are multiples of 8 (sublane aligned);
    #      gate slices sit at lane offsets 0 / G / 2G (vreg boundaries), so no
    #      cross-lane movement is needed to align r/z/n with h.
    def step(t, h):
        xi_t = xi_ref[pl.ds(t * B_pad, B_pad), :]                      # (B_pad, 3G)
        gh = jnp.dot(h, w_h, preferred_element_type=jnp.float32)       # (B_pad, 3G)
        # Fused r|z sigmoid: one EUP push for both gates (contiguous slab).
        rz = jax.nn.sigmoid(xi_t[:, 0:2 * G] + gh[:, 0:2 * G])
        r = rz[:, 0:G]
        z = rz[:, G:2 * G]
        n = jnp.tanh(xi_t[:, 2 * G:3 * G] + r * (gh[:, 2 * G:3 * G] + b_hn))
        # Padded lanes: xi = gh = 0 -> r = z = 0.5, n = 0, and with h_pad = 0
        # they stay 0 forever.  Padded batch rows carry bias-driven values but
        # never mix with real rows and are sliced off in the wrapper.
        return n + z * (h - n)                                         # == (1-z)*n + z*h

    h0 = jnp.zeros((B_pad, G), jnp.float32)
    h_T = lax.fori_loop(0, T, step, h0, unroll=True)

    # ---- Linear head on h_T; lane-dense (C padded to 128) full-width store.
    out_ref[...] = (jnp.dot(h_T, w_out_ref[...],
                            preferred_element_type=jnp.float32)
                    + b_out_ref[...])


# --------------------------------------------------------------------------
# One-time parameter preparation (hoisted out of the per-call path).
# --------------------------------------------------------------------------
def _pad_gate_cols(m, H, G):
    """(rows, 3H) gate-blocked [r|z|n] -> (rows, 3G), each gate zero-padded to G lanes."""
    rows = m.shape[0]
    m3 = m.reshape(rows, 3, H)
    m3 = jnp.pad(m3, ((0, 0), (0, 0), (0, G - H)))
    return m3.reshape(rows, 3 * G)


def prepare_params(w_ih, w_hh, b_ih, b_hh, w_lin, b_lin, hidden_size):
    """PyTorch GRU/Linear params -> kernel-layout arrays.  Call once, reuse."""
    H = hidden_size
    G = ((H + 127) // 128) * 128              # per-gate lane block
    C = w_lin.shape[0]
    C_pad = ((C + 127) // 128) * 128

    w_ih = jnp.asarray(w_ih, jnp.float32)     # (3H, D_in), gate order (r, z, n)
    w_hh = jnp.asarray(w_hh, jnp.float32)     # (3H, H)
    b_ih = jnp.asarray(b_ih, jnp.float32)
    b_hh = jnp.asarray(b_hh, jnp.float32)

    # Input-side weights, gate-blocked to 128-lane slabs.
    w_i = _pad_gate_cols(w_ih.T, H, G)                                  # (D_in, 3G)

    # r/z hidden biases fold into the input-side bias slab; n's hidden bias
    # (b_hn) stays separate because it is multiplied by r inside tanh.
    b_i_full = b_ih + jnp.concatenate([b_hh[:2 * H], jnp.zeros((H,), jnp.float32)])
    b_i = _pad_gate_cols(b_i_full.reshape(1, 3 * H), H, G)              # (1, 3G)
    b_hn = jnp.pad(b_hh[2 * H:3 * H].reshape(1, H), ((0, 0), (0, G - H)))  # (1, G)

    # Hidden-side weights: rows padded to G so h can live as a (B_pad, G) slab.
    w_h = jnp.pad(_pad_gate_cols(w_hh.T, H, G), ((0, G - H), (0, 0)))   # (G, 3G)

    # Linear head, padded to a 128-lane-dense slab; padded rows are zero so the
    # (zero) padded lanes of h contribute nothing.
    w_out = jnp.zeros((G, C_pad), jnp.float32).at[:H, :C].set(
        jnp.asarray(w_lin, jnp.float32).T)
    b_out = jnp.zeros((1, C_pad), jnp.float32).at[:, :C].set(
        jnp.asarray(b_lin, jnp.float32))

    return (w_i, b_i, w_h, b_hn, w_out, b_out)


# --------------------------------------------------------------------------
# Per-call forward: x layout transform + pallas_call fused under one jit.
# --------------------------------------------------------------------------
@functools.partial(jax.jit, static_argnames=("num_classes",))
def gruc_forward(x, params, num_classes=4):
    """x: (B, input_size, T), exactly like the PyTorch module's input."""
    w_i, b_i, w_h, b_hn, w_out, b_out = params
    B, d_in, T = x.shape
    G = w_h.shape[0]
    C_pad = w_out.shape[1]
    B_pad = ((max(B, 1) + 7) // 8) * 8        # sublane padding (>= 8)

    # (B, D_in, T) -> (T, B, D_in) -> pad batch -> (T*B_pad, D_in).
    # Stays inside this jit, so no extra per-call dispatches / HBM round-trips.
    x_tbd = jnp.transpose(x, (2, 0, 1)).astype(jnp.float32)
    x_tbd = jnp.pad(x_tbd, ((0, 0), (0, B_pad - B), (0, 0)))
    x_flat = x_tbd.reshape(T * B_pad, d_in)

    def full_spec(a):
        nd = a.ndim
        return pl.BlockSpec(a.shape, lambda i, nd=nd: (0,) * nd)

    inputs = (x_flat, w_i, b_i, w_h, b_hn, w_out, b_out)

    grid_spec = pltpu.PrefetchScalarGridSpec(
        num_scalar_prefetch=0,
        grid=(1,),                                   # single invocation
        in_specs=[full_spec(a) for a in inputs],
        out_specs=pl.BlockSpec((B_pad, C_pad), lambda i: (0, 0)),
        scratch_shapes=[pltpu.VMEM((T * B_pad, 3 * G), jnp.float32)],
    )

    out_padded = pl.pallas_call(
        functools.partial(gruc_kernel, T=T, B_pad=B_pad, G=G),
        out_shape=jax.ShapeDtypeStruct((B_pad, C_pad), jnp.float32),
        grid_spec=grid_spec,
        compiler_params=pltpu.CompilerParams(
            dimension_semantics=("arbitrary",)),
    )(*inputs)

    return out_padded[:B, :num_classes]


# --------------------------------------------------------------------------
# Deterministic parameter init (matches PyTorch default U(-1/sqrt(H), 1/sqrt(H)))
# --------------------------------------------------------------------------
def init_params(key, input_size=22, hidden_size=16, num_classes=4):
    k = 1.0 / float(hidden_size) ** 0.5
    ks = jax.random.split(key, 6)
    w_ih = jax.random.uniform(ks[0], (3 * hidden_size, input_size), jnp.float32, -k, k)
    w_hh = jax.random.uniform(ks[1], (3 * hidden_size, hidden_size), jnp.float32, -k, k)
    b_ih = jax.random.uniform(ks[2], (3 * hidden_size,), jnp.float32, -k, k)
    b_hh = jax.random.uniform(ks[3], (3 * hidden_size,), jnp.float32, -k, k)
    w_lin = jax.random.uniform(ks[4], (num_classes, hidden_size), jnp.float32, -k, k)
    b_lin = jax.random.uniform(ks[5], (num_classes,), jnp.float32, -k, k)
    return w_ih, w_hh, b_ih, b_hh, w_lin, b_lin


# Pure-JAX reference (PyTorch GRU semantics) for correctness check.
def gruc_ref(x, w_ih, w_hh, b_ih, b_hh, w_lin, b_lin, H):
    xb = jnp.transpose(x, (0, 2, 1))          # (B, T, D_in)
    B, T, _ = xb.shape
    h = jnp.zeros((B, H), jnp.float32)
    for t in range(T):
        xt = xb[:, t, :]
        gi = xt @ w_ih.T + b_ih
        gh = h @ w_hh.T + b_hh
        i_r, i_z, i_n = gi[:, :H], gi[:, H:2 * H], gi[:, 2 * H:]
        h_r, h_z, h_n = gh[:, :H], gh[:, H:2 * H], gh[:, 2 * H:]
        r = jax.nn.sigmoid(i_r + h_r)
        z = jax.nn.sigmoid(i_z + h_z)
        n = jnp.tanh(i_n + r * h_n)
        h = (1.0 - z) * n + z * h
    return h @ w_lin.T + b_lin


if __name__ == "__main__":
    INPUT_SIZE, HIDDEN, CLASSES = 22, 16, 4
    B, T = 2, 8

    key = jax.random.PRNGKey(0)
    k_x, k_p = jax.random.split(key)
    x = jax.random.normal(k_x, (B, INPUT_SIZE, T), jnp.float32)   # (B, C, L) like PyTorch
    raw_params = init_params(k_p, INPUT_SIZE, HIDDEN, CLASSES)

    # One-time prep (hoisted out of the per-call path), then the jitted forward.
    params = prepare_params(*raw_params, hidden_size=HIDDEN)
    params = jax.block_until_ready(params)

    out = gruc_forward(x, params, num_classes=CLASSES)
    out = jax.block_until_ready(out)

    ref = gruc_ref(x, *raw_params, H=HIDDEN)
    assert out.shape == (B, CLASSES)
    assert jnp.allclose(out, ref, atol=1e-5, rtol=1e-5), (out, ref)

    print("KERNEL_OK")
</pallas_src>

<mosaic_0001>
module attributes {stable_mosaic.version = 11 : i64} {
  func.func @gruc_kernel(%arg0: i32, %arg1: memref<64x22xf32, #tpu.memory_space<vmem>>, %arg2: memref<22x384xf32, #tpu.memory_space<vmem>>, %arg3: memref<1x384xf32, #tpu.memory_space<vmem>>, %arg4: memref<128x384xf32, #tpu.memory_space<vmem>>, %arg5: memref<1x128xf32, #tpu.memory_space<vmem>>, %arg6: memref<128x128xf32, #tpu.memory_space<vmem>>, %arg7: memref<1x128xf32, #tpu.memory_space<vmem>>, %arg8: memref<8x128xf32, #tpu.memory_space<vmem>>, %arg9: memref<64x384xf32, #tpu.memory_space<vmem>>) attributes {dimension_semantics = [#tpu.dimension_semantics<arbitrary>], iteration_bounds = array<i64: 1>, scalar_prefetch = 0 : i64, scratch_operands = 1 : i64, tpu.core_type = #tpu.core_type<tc>, window_params = [{pipeline_mode = #tpu.pipeline_mode<synchronous>, transform_indices = @transform_0, window_bounds = array<i64: 64, 22>}, {pipeline_mode = #tpu.pipeline_mode<synchronous>, transform_indices = @transform_1, window_bounds = array<i64: 22, 384>}, {pipeline_mode = #tpu.pipeline_mode<synchronous>, transform_indices = @transform_2, window_bounds = array<i64: 1, 384>}, {pipeline_mode = #tpu.pipeline_mode<synchronous>, transform_indices = @transform_3, window_bounds = array<i64: 128, 384>}, {pipeline_mode = #tpu.pipeline_mode<synchronous>, transform_indices = @transform_4, window_bounds = array<i64: 1, 128>}, {pipeline_mode = #tpu.pipeline_mode<synchronous>, transform_indices = @transform_5, window_bounds = array<i64: 128, 128>}, {pipeline_mode = #tpu.pipeline_mode<synchronous>, transform_indices = @transform_6, window_bounds = array<i64: 1, 128>}, {pipeline_mode = #tpu.pipeline_mode<synchronous>, transform_indices = @transform_7, window_bounds = array<i64: 8, 128>}]} {
    %c0 = arith.constant 0 : index
    %c0_0 = arith.constant 0 : index
    %0 = vector.load %arg1[%c0, %c0_0] : memref<64x22xf32, #tpu.memory_space<vmem>>, vector<64x22xf32>
    %c0_1 = arith.constant 0 : index
    %c0_2 = arith.constant 0 : index
    %1 = vector.load %arg2[%c0_1, %c0_2] : memref<22x384xf32, #tpu.memory_space<vmem>>, vector<22x384xf32>
    %cst = arith.constant dense<0.000000e+00> : vector<64x384xf32>
    %2 = tpu.matmul %0, %1, %cst {dimension_numbers = #tpu.dot_dimension_numbers<[1], [0], [0], [1], [0, 0, 1, 1], [], []>} : vector<64x22xf32>, vector<22x384xf32>, vector<64x384xf32> -> vector<64x384xf32>
    %c0_3 = arith.constant 0 : index
    %c0_4 = arith.constant 0 : index
    %3 = vector.load %arg3[%c0_3, %c0_4] : memref<1x384xf32, #tpu.memory_space<vmem>>, vector<1x384xf32>
    %4 = vector.broadcast %3 : vector<1x384xf32> to vector<64x384xf32>
    %5 = arith.addf %2, %4 : vector<64x384xf32>
    %c0_5 = arith.constant 0 : index
    %c0_6 = arith.constant 0 : index
    %6 = vector.load %arg9[%c0_5, %c0_6] : memref<64x384xf32, #tpu.memory_space<vmem>>, vector<64x384xf32>
    tpu.vector_store %arg9[%c0_5, %c0_6], %5 {strides = array<i32>} : memref<64x384xf32, #tpu.memory_space<vmem>>, vector<64x384xf32>,
    %c0_7 = arith.constant 0 : index
    %c0_8 = arith.constant 0 : index
    %7 = vector.load %arg4[%c0_7, %c0_8] : memref<128x384xf32, #tpu.memory_space<vmem>>, vector<128x384xf32>
    %c0_9 = arith.constant 0 : index
    %c0_10 = arith.constant 0 : index
    %8 = vector.load %arg5[%c0_9, %c0_10] : memref<1x128xf32, #tpu.memory_space<vmem>>, vector<1x128xf32>
    %cst_11 = arith.constant 0.000000e+00 : f32
    %9 = vector.broadcast %cst_11 : f32 to vector<8x128xf32>
    %c0_i32 = arith.constant 0 : i32
    %c8_i32 = arith.constant 8 : i32
    %10 = arith.muli %c0_i32, %c8_i32 : i32
    %11 = arith.index_cast %10 : i32 to index
    %c0_12 = arith.constant 0 : index
    %12 = vector.load %arg9[%11, %c0_12] : memref<64x384xf32, #tpu.memory_space<vmem>>, vector<8x384xf32>
    %cst_13 = arith.constant dense<0.000000e+00> : vector<8x384xf32>
    %13 = tpu.matmul %9, %7, %cst_13 {dimension_numbers = #tpu.dot_dimension_numbers<[1], [0], [0], [1], [0, 0, 1, 1], [], []>} : vector<8x128xf32>, vector<128x384xf32>, vector<8x384xf32> -> vector<8x384xf32>
    %14 = vector.extract_strided_slice %12 {offsets = [0, 0], sizes = [8, 256], strides = [1, 1]} : vector<8x384xf32> to vector<8x256xf32>
    %15 = vector.extract_strided_slice %13 {offsets = [0, 0], sizes = [8, 256], strides = [1, 1]} : vector<8x384xf32> to vector<8x256xf32>
    %16 = arith.addf %14, %15 : vector<8x256xf32>
    %17 = arith.negf %16 : vector<8x256xf32>
    %18 = math.exp %17 : vector<8x256xf32>
    %cst_14 = arith.constant 1.000000e+00 : f32
    %19 = vector.broadcast %cst_14 : f32 to vector<8x256xf32>
    %20 = arith.addf %19, %18 : vector<8x256xf32>
    %21 = arith.divf %19, %20 : vector<8x256xf32>
    %22 = vector.extract_strided_slice %21 {offsets = [0, 0], sizes = [8, 128], strides = [1, 1]} : vector<8x256xf32> to vector<8x128xf32>
    %23 = vector.extract_strided_slice %21 {offsets = [0, 128], sizes = [8, 128], strides = [1, 1]} : vector<8x256xf32> to vector<8x128xf32>
    %24 = vector.extract_strided_slice %12 {offsets = [0, 256], sizes = [8, 128], strides = [1, 1]} : vector<8x384xf32> to vector<8x128xf32>
    %25 = vector.extract_strided_slice %13 {offsets = [0, 256], sizes = [8, 128], strides = [1, 1]} : vector<8x384xf32> to vector<8x128xf32>
    %26 = vector.broadcast %8 : vector<1x128xf32> to vector<8x128xf32>
    %27 = arith.addf %25, %26 : vector<8x128xf32>
    %28 = arith.mulf %22, %27 : vector<8x128xf32>
    %29 = arith.addf %24, %28 : vector<8x128xf32>
    %30 = math.tanh %29 : vector<8x128xf32>
    %31 = arith.subf %9, %30 : vector<8x128xf32>
    %32 = arith.mulf %23, %31 : vector<8x128xf32>
    %33 = arith.addf %30, %32 : vector<8x128xf32>
    %c1_i32 = arith.constant 1 : i32
    %c8_i32_15 = arith.constant 8 : i32
    %34 = arith.muli %c1_i32, %c8_i32_15 : i32
    %35 = arith.index_cast %34 : i32 to index
    %c0_16 = arith.constant 0 : index
    %36 = vector.load %arg9[%35, %c0_16] : memref<64x384xf32, #tpu.memory_space<vmem>>, vector<8x384xf32>
    %cst_17 = arith.constant dense<0.000000e+00> : vector<8x384xf32>
    %37 = tpu.matmul %33, %7, %cst_17 {dimension_numbers = #tpu.dot_dimension_numbers<[1], [0], [0], [1], [0, 0, 1, 1], [], []>} : vector<8x128xf32>, vector<128x384xf32>, vector<8x384xf32> -> vector<8x384xf32>
    %38 = vector.extract_strided_slice %36 {offsets = [0, 0], sizes = [8, 256], strides = [1, 1]} : vector<8x384xf32> to vector<8x256xf32>
    %39 = vector.extract_strided_slice %37 {offsets = [0, 0], sizes = [8, 256], strides = [1, 1]} : vector<8x384xf32> to vector<8x256xf32>
    %40 = arith.addf %38, %39 : vector<8x256xf32>
    %41 = arith.negf %40 : vector<8x256xf32>
    %42 = math.exp %41 : vector<8x256xf32>
    %cst_18 = arith.constant 1.000000e+00 : f32
    %43 = vector.broadcast %cst_18 : f32 to vector<8x256xf32>
    %44 = arith.addf %43, %42 : vector<8x256xf32>
    %45 = arith.divf %43, %44 : vector<8x256xf32>
    %46 = vector.extract_strided_slice %45 {offsets = [0, 0], sizes = [8, 128], strides = [1, 1]} : vector<8x256xf32> to vector<8x128xf32>
    %47 = vector.extract_strided_slice %45 {offsets = [0, 128], sizes = [8, 128], strides = [1, 1]} : vector<8x256xf32> to vector<8x128xf32>
    %48 = vector.extract_strided_slice %36 {offsets = [0, 256], sizes = [8, 128], strides = [1, 1]} : vector<8x384xf32> to vector<8x128xf32>
    %49 = vector.extract_strided_slice %37 {offsets = [0, 256], sizes = [8, 128], strides = [1, 1]} : vector<8x384xf32> to vector<8x128xf32>
    %50 = vector.broadcast %8 : vector<1x128xf32> to vector<8x128xf32>
    %51 = arith.addf %49, %50 : vector<8x128xf32>
    %52 = arith.mulf %46, %51 : vector<8x128xf32>
    %53 = arith.addf %48, %52 : vector<8x128xf32>
    %54 = math.tanh %53 : vector<8x128xf32>
    %55 = arith.subf %33, %54 : vector<8x128xf32>
    %56 = arith.mulf %47, %55 : vector<8x128xf32>
    %57 = arith.addf %54, %56 : vector<8x128xf32>
    %c2_i32 = arith.constant 2 : i32
    %c8_i32_19 = arith.constant 8 : i32
    %58 = arith.muli %c2_i32, %c8_i32_19 : i32
    %59 = arith.index_cast %58 : i32 to index
    %c0_20 = arith.constant 0 : index
    %60 = vector.load %arg9[%59, %c0_20] : memref<64x384xf32, #tpu.memory_space<vmem>>, vector<8x384xf32>
    %cst_21 = arith.constant dense<0.000000e+00> : vector<8x384xf32>
    %61 = tpu.matmul %57, %7, %cst_21 {dimension_numbers = #tpu.dot_dimension_numbers<[1], [0], [0], [1], [0, 0, 1, 1], [], []>} : vector<8x128xf32>, vector<128x384xf32>, vector<8x384xf32> -> vector<8x384xf32>
    %62 = vector.extract_strided_slice %60 {offsets = [0, 0], sizes = [8, 256], strides = [1, 1]} : vector<8x384xf32> to vector<8x256xf32>
    %63 = vector.extract_strided_slice %61 {offsets = [0, 0], sizes = [8, 256], strides = [1, 1]} : vector<8x384xf32> to vector<8x256xf32>
    %64 = arith.addf %62, %63 : vector<8x256xf32>
    %65 = arith.negf %64 : vector<8x256xf32>
    %66 = math.exp %65 : vector<8x256xf32>
    %cst_22 = arith.constant 1.000000e+00 : f32
    %67 = vector.broadcast %cst_22 : f32 to vector<8x256xf32>
    %68 = arith.addf %67, %66 : vector<8x256xf32>
    %69 = arith.divf %67, %68 : vector<8x256xf32>
    %70 = vector.extract_strided_slice %69 {offsets = [0, 0], sizes = [8, 128], strides = [1, 1]} : vector<8x256xf32> to vector<8x128xf32>
    %71 = vector.extract_strided_slice %69 {offsets = [0, 128], sizes = [8, 128], strides = [1, 1]} : vector<8x256xf32> to vector<8x128xf32>
    %72 = vector.extract_strided_slice %60 {offsets = [0, 256], sizes = [8, 128], strides = [1, 1]} : vector<8x384xf32> to vector<8x128xf32>
    %73 = vector.extract_strided_slice %61 {offsets = [0, 256], sizes = [8, 128], strides = [1, 1]} : vector<8x384xf32> to vector<8x128xf32>
    %74 = vector.broadcast %8 : vector<1x128xf32> to vector<8x128xf32>
    %75 = arith.addf %73, %74 : vector<8x128xf32>
    %76 = arith.mulf %70, %75 : vector<8x128xf32>
    %77 = arith.addf %72, %76 : vector<8x128xf32>
    %78 = math.tanh %77 : vector<8x128xf32>
    %79 = arith.subf %57, %78 : vector<8x128xf32>
    %80 = arith.mulf %71, %79 : vector<8x128xf32>
    %81 = arith.addf %78, %80 : vector<8x128xf32>
    %c3_i32 = arith.constant 3 : i32
    %c8_i32_23 = arith.constant 8 : i32
    %82 = arith.muli %c3_i32, %c8_i32_23 : i32
    %83 = arith.index_cast %82 : i32 to index
    %c0_24 = arith.constant 0 : index
    %84 = vector.load %arg9[%83, %c0_24] : memref<64x384xf32, #tpu.memory_space<vmem>>, vector<8x384xf32>
    %cst_25 = arith.constant dense<0.000000e+00> : vector<8x384xf32>
    %85 = tpu.matmul %81, %7, %cst_25 {dimension_numbers = #tpu.dot_dimension_numbers<[1], [0], [0], [1], [0, 0, 1, 1], [], []>} : vector<8x128xf32>, vector<128x384xf32>, vector<8x384xf32> -> vector<8x384xf32>
    %86 = vector.extract_strided_slice %84 {offsets = [0, 0], sizes = [8, 256], strides = [1, 1]} : vector<8x384xf32> to vector<8x256xf32>
    %87 = vector.extract_strided_slice %85 {offsets = [0, 0], sizes = [8, 256], strides = [1, 1]} : vector<8x384xf32> to vector<8x256xf32>
    %88 = arith.addf %86, %87 : vector<8x256xf32>
    %89 = arith.negf %88 : vector<8x256xf32>
    %90 = math.exp %89 : vector<8x256xf32>
    %cst_26 = arith.constant 1.000000e+00 : f32
    %91 = vector.broadcast %cst_26 : f32 to vector<8x256xf32>
    %92 = arith.addf %91, %90 : vector<8x256xf32>
    %93 = arith.divf %91, %92 : vector<8x256xf32>
    %94 = vector.extract_strided_slice %93 {offsets = [0, 0], sizes = [8, 128], strides = [1, 1]} : vector<8x256xf32> to vector<8x128xf32>
    %95 = vector.extract_strided_slice %93 {offsets = [0, 128], sizes = [8, 128], strides = [1, 1]} : vector<8x256xf32> to vector<8x128xf32>
    %96 = vector.extract_strided_slice %84 {offsets = [0, 256], sizes = [8, 128], strides = [1, 1]} : vector<8x384xf32> to vector<8x128xf32>
    %97 = vector.extract_strided_slice %85 {offsets = [0, 256], sizes = [8, 128], strides = [1, 1]} : vector<8x384xf32> to vector<8x128xf32>
    %98 = vector.broadcast %8 : vector<1x128xf32> to vector<8x128xf32>
    %99 = arith.addf %97, %98 : vector<8x128xf32>
    %100 = arith.mulf %94, %99 : vector<8x128xf32>
    %101 = arith.addf %96, %100 : vector<8x128xf32>
    %102 = math.tanh %101 : vector<8x128xf32>
    %103 = arith.subf %81, %102 : vector<8x128xf32>
    %104 = arith.mulf %95, %103 : vector<8x128xf32>
    %105 = arith.addf %102, %104 : vector<8x128xf32>
    %c4_i32 = arith.constant 4 : i32
    %c8_i32_27 = arith.constant 8 : i32
    %106 = arith.muli %c4_i32, %c8_i32_27 : i32
    %107 = arith.index_cast %106 : i32 to index
    %c0_28 = arith.constant 0 : index
    %108 = vector.load %arg9[%107, %c0_28] : memref<64x384xf32, #tpu.memory_space<vmem>>, vector<8x384xf32>
    %cst_29 = arith.constant dense<0.000000e+00> : vector<8x384xf32>
    %109 = tpu.matmul %105, %7, %cst_29 {dimension_numbers = #tpu.dot_dimension_numbers<[1], [0], [0], [1], [0, 0, 1, 1], [], []>} : vector<8x128xf32>, vector<128x384xf32>, vector<8x384xf32> -> vector<8x384xf32>
    %110 = vector.extract_strided_slice %108 {offsets = [0, 0], sizes = [8, 256], strides = [1, 1]} : vector<8x384xf32> to vector<8x256xf32>
    %111 = vector.extract_strided_slice %109 {offsets = [0, 0], sizes = [8, 256], strides = [1, 1]} : vector<8x384xf32> to vector<8x256xf32>
    %112 = arith.addf %110, %111 : vector<8x256xf32>
    %113 = arith.negf %112 : vector<8x256xf32>
    %114 = math.exp %113 : vector<8x256xf32>
    %cst_30 = arith.constant 1.000000e+00 : f32
    %115 = vector.broadcast %cst_30 : f32 to vector<8x256xf32>
    %116 = arith.addf %115, %114 : vector<8x256xf32>
    %117 = arith.divf %115, %116 : vector<8x256xf32>
    %118 = vector.extract_strided_slice %117 {offsets = [0, 0], sizes = [8, 128], strides = [1, 1]} : vector<8x256xf32> to vector<8x128xf32>
    %119 = vector.extract_strided_slice %117 {offsets = [0, 128], sizes = [8, 128], strides = [1, 1]} : vector<8x256xf32> to vector<8x128xf32>
    %120 = vector.extract_strided_slice %108 {offsets = [0, 256], sizes = [8, 128], strides = [1, 1]} : vector<8x384xf32> to vector<8x128xf32>
    %121 = vector.extract_strided_slice %109 {offsets = [0, 256], sizes = [8, 128], strides = [1, 1]} : vector<8x384xf32> to vector<8x128xf32>
    %122 = vector.broadcast %8 : vector<1x128xf32> to vector<8x128xf32>
    %123 = arith.addf %121, %122 : vector<8x128xf32>
    %124 = arith.mulf %118, %123 : vector<8x128xf32>
    %125 = arith.addf %120, %124 : vector<8x128xf32>
    %126 = math.tanh %125 : vector<8x128xf32>
    %127 = arith.subf %105, %126 : vector<8x128xf32>
    %128 = arith.mulf %119, %127 : vector<8x128xf32>
    %129 = arith.addf %126, %128 : vector<8x128xf32>
    %c5_i32 = arith.constant 5 : i32
    %c8_i32_31 = arith.constant 8 : i32
    %130 = arith.muli %c5_i32, %c8_i32_31 : i32
    %131 = arith.index_cast %130 : i32 to index
    %c0_32 = arith.constant 0 : index
    %132 = vector.load %arg9[%131, %c0_32] : memref<64x384xf32, #tpu.memory_space<vmem>>, vector<8x384xf32>
    %cst_33 = arith.constant dense<0.000000e+00> : vector<8x384xf32>
    %133 = tpu.matmul %129, %7, %cst_33 {dimension_numbers = #tpu.dot_dimension_numbers<[1], [0], [0], [1], [0, 0, 1, 1], [], []>} : vector<8x128xf32>, vector<128x384xf32>, vector<8x384xf32> -> vector<8x384xf32>
    %134 = vector.extract_strided_slice %132 {offsets = [0, 0], sizes = [8, 256], strides = [1, 1]} : vector<8x384xf32> to vector<8x256xf32>
    %135 = vector.extract_strided_slice %133 {offsets = [0, 0], sizes = [8, 256], strides = [1, 1]} : vector<8x384xf32> to vector<8x256xf32>
    %136 = arith.addf %134, %135 : vector<8x256xf32>
    %137 = arith.negf %136 : vector<8x256xf32>
    %138 = math.exp %137 : vector<8x256xf32>
    %cst_34 = arith.constant 1.000000e+00 : f32
    %139 = vector.broadcast %cst_34 : f32 to vector<8x256xf32>
    %140 = arith.addf %139, %138 : vector<8x256xf32>
    %141 = arith.divf %139, %140 : vector<8x256xf32>
    %142 = vector.extract_strided_slice %141 {offsets = [0, 0], sizes = [8, 128], strides = [1, 1]} : vector<8x256xf32> to vector<8x128xf32>
    %143 = vector.extract_strided_slice %141 {offsets = [0, 128], sizes = [8, 128], strides = [1, 1]} : vector<8x256xf32> to vector<8x128xf32>
    %144 = vector.extract_strided_slice %132 {offsets = [0, 256], sizes = [8, 128], strides = [1, 1]} : vector<8x384xf32> to vector<8x128xf32>
    %145 = vector.extract_strided_slice %133 {offsets = [0, 256], sizes = [8, 128], strides = [1, 1]} : vector<8x384xf32> to vector<8x128xf32>
    %146 = vector.broadcast %8 : vector<1x128xf32> to vector<8x128xf32>
    %147 = arith.addf %145, %146 : vector<8x128xf32>
    %148 = arith.mulf %142, %147 : vector<8x128xf32>
    %149 = arith.addf %144, %148 : vector<8x128xf32>
    %150 = math.tanh %149 : vector<8x128xf32>
    %151 = arith.subf %129, %150 : vector<8x128xf32>
    %152 = arith.mulf %143, %151 : vector<8x128xf32>
    %153 = arith.addf %150, %152 : vector<8x128xf32>
    %c6_i32 = arith.constant 6 : i32
    %c8_i32_35 = arith.constant 8 : i32
    %154 = arith.muli %c6_i32, %c8_i32_35 : i32
    %155 = arith.index_cast %154 : i32 to index
    %c0_36 = arith.constant 0 : index
    %156 = vector.load %arg9[%155, %c0_36] : memref<64x384xf32, #tpu.memory_space<vmem>>, vector<8x384xf32>
    %cst_37 = arith.constant dense<0.000000e+00> : vector<8x384xf32>
    %157 = tpu.matmul %153, %7, %cst_37 {dimension_numbers = #tpu.dot_dimension_numbers<[1], [0], [0], [1], [0, 0, 1, 1], [], []>} : vector<8x128xf32>, vector<128x384xf32>, vector<8x384xf32> -> vector<8x384xf32>
    %158 = vector.extract_strided_slice %156 {offsets = [0, 0], sizes = [8, 256], strides = [1, 1]} : vector<8x384xf32> to vector<8x256xf32>
    %159 = vector.extract_strided_slice %157 {offsets = [0, 0], sizes = [8, 256], strides = [1, 1]} : vector<8x384xf32> to vector<8x256xf32>
    %160 = arith.addf %158, %159 : vector<8x256xf32>
    %161 = arith.negf %160 : vector<8x256xf32>
    %162 = math.exp %161 : vector<8x256xf32>
    %cst_38 = arith.constant 1.000000e+00 : f32
    %163 = vector.broadcast %cst_38 : f32 to vector<8x256xf32>
    %164 = arith.addf %163, %162 : vector<8x256xf32>
    %165 = arith.divf %163, %164 : vector<8x256xf32>
    %166 = vector.extract_strided_slice %165 {offsets = [0, 0], sizes = [8, 128], strides = [1, 1]} : vector<8x256xf32> to vector<8x128xf32>
    %167 = vector.extract_strided_slice %165 {offsets = [0, 128], sizes = [8, 128], strides = [1, 1]} : vector<8x256xf32> to vector<8x128xf32>
    %168 = vector.extract_strided_slice %156 {offsets = [0, 256], sizes = [8, 128], strides = [1, 1]} : vector<8x384xf32> to vector<8x128xf32>
    %169 = vector.extract_strided_slice %157 {offsets = [0, 256], sizes = [8, 128], strides = [1, 1]} : vector<8x384xf32> to vector<8x128xf32>
    %170 = vector.broadcast %8 : vector<1x128xf32> to vector<8x128xf32>
    %171 = arith.addf %169, %170 : vector<8x128xf32>
    %172 = arith.mulf %166, %171 : vector<8x128xf32>
    %173 = arith.addf %168, %172 : vector<8x128xf32>
    %174 = math.tanh %173 : vector<8x128xf32>
    %175 = arith.subf %153, %174 : vector<8x128xf32>
    %176 = arith.mulf %167, %175 : vector<8x128xf32>
    %177 = arith.addf %174, %176 : vector<8x128xf32>
    %c7_i32 = arith.constant 7 : i32
    %c8_i32_39 = arith.constant 8 : i32
    %178 = arith.muli %c7_i32, %c8_i32_39 : i32
    %179 = arith.index_cast %178 : i32 to index
    %c0_40 = arith.constant 0 : index
    %180 = vector.load %arg9[%179, %c0_40] : memref<64x384xf32, #tpu.memory_space<vmem>>, vector<8x384xf32>
    %cst_41 = arith.constant dense<0.000000e+00> : vector<8x384xf32>
    %181 = tpu.matmul %177, %7, %cst_41 {dimension_numbers = #tpu.dot_dimension_numbers<[1], [0], [0], [1], [0, 0, 1, 1], [], []>} : vector<8x128xf32>, vector<128x384xf32>, vector<8x384xf32> -> vector<8x384xf32>
    %182 = vector.extract_strided_slice %180 {offsets = [0, 0], sizes = [8, 256], strides = [1, 1]} : vector<8x384xf32> to vector<8x256xf32>
    %183 = vector.extract_strided_slice %181 {offsets = [0, 0], sizes = [8, 256], strides = [1, 1]} : vector<8x384xf32> to vector<8x256xf32>
    %184 = arith.addf %182, %183 : vector<8x256xf32>
    %185 = arith.negf %184 : vector<8x256xf32>
    %186 = math.exp %185 : vector<8x256xf32>
    %cst_42 = arith.constant 1.000000e+00 : f32
    %187 = vector.broadcast %cst_42 : f32 to vector<8x256xf32>
    %188 = arith.addf %187, %186 : vector<8x256xf32>
    %189 = arith.divf %187, %188 : vector<8x256xf32>
    %190 = vector.extract_strided_slice %189 {offsets = [0, 0], sizes = [8, 128], strides = [1, 1]} : vector<8x256xf32> to vector<8x128xf32>
    %191 = vector.extract_strided_slice %189 {offsets = [0, 128], sizes = [8, 128], strides = [1, 1]} : vector<8x256xf32> to vector<8x128xf32>
    %192 = vector.extract_strided_slice %180 {offsets = [0, 256], sizes = [8, 128], strides = [1, 1]} : vector<8x384xf32> to vector<8x128xf32>
    %193 = vector.extract_strided_slice %181 {offsets = [0, 256], sizes = [8, 128], strides = [1, 1]} : vector<8x384xf32> to vector<8x128xf32>
    %194 = vector.broadcast %8 : vector<1x128xf32> to vector<8x128xf32>
    %195 = arith.addf %193, %194 : vector<8x128xf32>
    %196 = arith.mulf %190, %195 : vector<8x128xf32>
    %197 = arith.addf %192, %196 : vector<8x128xf32>
    %198 = math.tanh %197 : vector<8x128xf32>
    %199 = arith.subf %177, %198 : vector<8x128xf32>
    %200 = arith.mulf %191, %199 : vector<8x128xf32>
    %201 = arith.addf %198, %200 : vector<8x128xf32>
    %c8_i32_43 = arith.constant 8 : i32
    %c0_44 = arith.constant 0 : index
    %c0_45 = arith.constant 0 : index
    %202 = vector.load %arg6[%c0_44, %c0_45] : memref<128x128xf32, #tpu.memory_space<vmem>>, vector<128x128xf32>
    %cst_46 = arith.constant dense<0.000000e+00> : vector<8x128xf32>
    %203 = tpu.matmul %201, %202, %cst_46 {dimension_numbers = #tpu.dot_dimension_numbers<[1], [0], [0], [1], [0, 0, 1, 1], [], []>} : vector<8x128xf32>, vector<128x128xf32>, vector<8x128xf32> -> vector<8x128xf32>
    %c0_47 = arith.constant 0 : index
    %c0_48 = arith.constant 0 : index
    %204 = vector.load %arg7[%c0_47, %c0_48] : memref<1x128xf32, #tpu.memory_space<vmem>>, vector<1x128xf32>
    %205 = vector.broadcast %204 : vector<1x128xf32> to vector<8x128xf32>
    %206 = arith.addf %203, %205 : vector<8x128xf32>
    %c0_49 = arith.constant 0 : index
    %c0_50 = arith.constant 0 : index
    %207 = vector.load %arg8[%c0_49, %c0_50] : memref<8x128xf32, #tpu.memory_space<vmem>>, vector<8x128xf32>
    tpu.vector_store %arg8[%c0_49, %c0_50], %206 {strides = array<i32>} : memref<8x128xf32, #tpu.memory_space<vmem>>, vector<8x128xf32>,
    return
  }
  func.func @transform_0(%arg0: i32) -> (i32, i32) {
    %c0_i32 = arith.constant 0 : i32
    %c0_i32_0 = arith.constant 0 : i32
    %c0_i32_1 = arith.constant 0 : i32
    return %c0_i32, %c0_i32_0 : i32, i32
  }
  func.func @transform_1(%arg0: i32) -> (i32, i32) {
    %c0_i32 = arith.constant 0 : i32
    %c0_i32_0 = arith.constant 0 : i32
    %c0_i32_1 = arith.constant 0 : i32
    return %c0_i32, %c0_i32_0 : i32, i32
  }
  func.func @transform_2(%arg0: i32) -> (i32, i32) {
    %c0_i32 = arith.constant 0 : i32
    %c0_i32_0 = arith.constant 0 : i32
    %c0_i32_1 = arith.constant 0 : i32
    return %c0_i32, %c0_i32_0 : i32, i32
  }
  func.func @transform_3(%arg0: i32) -> (i32, i32) {
    %c0_i32 = arith.constant 0 : i32
    %c0_i32_0 = arith.constant 0 : i32
    %c0_i32_1 = arith.constant 0 : i32
    return %c0_i32, %c0_i32_0 : i32, i32
  }
  func.func @transform_4(%arg0: i32) -> (i32, i32) {
    %c0_i32 = arith.constant 0 : i32
    %c0_i32_0 = arith.constant 0 : i32
    %c0_i32_1 = arith.constant 0 : i32
    return %c0_i32, %c0_i32_0 : i32, i32
  }
  func.func @transform_5(%arg0: i32) -> (i32, i32) {
    %c0_i32 = arith.constant 0 : i32
    %c0_i32_0 = arith.constant 0 : i32
    %c0_i32_1 = arith.constant 0 : i32
    return %c0_i32, %c0_i32_0 : i32, i32
  }
  func.func @transform_6(%arg0: i32) -> (i32, i32) {
    %c0_i32 = arith.constant 0 : i32
    %c0_i32_0 = arith.constant 0 : i32
    %c0_i32_1 = arith.constant 0 : i32
    return %c0_i32, %c0_i32_0 : i32, i32
  }
  func.func @transform_7(%arg0: i32) -> (i32, i32) {
    %c0_i32 = arith.constant 0 : i32
    %c0_i32_0 = arith.constant 0 : i32
    %c0_i32_1 = arith.constant 0 : i32
    return %c0_i32, %c0_i32_0 : i32, i32
  }
}

</mosaic_0001>

<llo_original>
// kernel: gruc_forward.1
$region0: #{gruc_forward.1}
  #allocation0 [shape = 'u32[]', space=smem, size = 0x4, offset = 0x4, fixed_abs, tag = 'smem constant byte address 0x4 - core index']
  #allocation1 [shape = 'u32[72,128]{1,0:T(1,128)}', space=vmem, size = 0x9000, scoped, tag = 'internal scratch']
  #allocation2 [shape = 'f32[64,384]{1,0:T(8,128)}', space=vmem, size = 0x18000, scoped, tag = 'scratch operand']
  %s0 = inlined_call_operand.vmem [shape: f32[64,22], index: 0, kind: input, shape index: {}]
  %s1 = inlined_call_operand.vmem [shape: f32[22,384], index: 1, kind: input, shape index: {}]
  %s2 = inlined_call_operand.vmem [shape: f32[1,384], index: 2, kind: input, shape index: {}]
  %s3 = inlined_call_operand.hbm [shape: f32[128,384], index: 3, kind: input, shape index: {}]
  %s4 = inlined_call_operand.vmem [shape: f32[1,128], index: 4, kind: input, shape index: {}]
  %s5 = inlined_call_operand.hbm [shape: f32[128,128], index: 5, kind: input, shape index: {}]
  %s6 = inlined_call_operand.vmem [shape: f32[1,128], index: 6, kind: input, shape index: {}]
  %s7 = inlined_call_operand.vmem [shape: f32[8,128], index: 7, kind: output, shape index: {}]
  %s8 = sld [smem:[#allocation0]]
  $region46: #{gruc_forward.1} parent=0
    _
  %s10 = ssub.s32 1, %s8
  %s11 = scalar_select 0, %s10, %s8
  $region1: #{gruc_forward.1} parent=0
    #allocation3 [shape = 'u8[196608]{0}', space=vmem, size = 0x30000, scoped, tag = 'input window, operand 3, single buffered']
    #allocation4 [shape = 's32[1]{0}', space=sflag, size = 0x4, scoped, tag = 'scoped memory for gruc_forward.1']
    #allocation5 [shape = 'u8[65536]{0}', space=vmem, size = 0x10000, scoped, tag = 'input window, operand 5, single buffered']
    #allocation6 [shape = 's32[1]{0}', space=sflag, size = 0x4, scoped, tag = 'scoped memory for gruc_forward.1']
    %12 = vsyncpa [#allocation4], 0
    %13 = vsyncpa [#allocation6], 0
    // Predicated region
    $region2: #{gruc_forward.1} parent=1 // pred_check
      _
    $region3: #{gruc_forward.1} parent=1 // pred_check_branch
      %15 = sbr.rel (0) target = $region5
    $region4: #{gruc_forward.1} parent=1 // pred_region
      _
    $region5: #{gruc_forward.1} parent=1 // pred_fallthru
      _
    // Predicated region
    $region6: #{gruc_forward.1} parent=1 // pred_check
      _
    $region7: #{gruc_forward.1} parent=1 // pred_check_branch
      %17 = sbr.rel (0) target = $region9
    $region8: #{gruc_forward.1} parent=1 // pred_region
      _
    $region9: #{gruc_forward.1} parent=1 // pred_fallthru
      _
    // Predicated region
    $region10: #{gruc_forward.1} parent=1 // pred_check
      _
    $region11: #{gruc_forward.1} parent=1 // pred_check_branch
      %19 = sbr.rel (0) target = $region13
    $region12: #{gruc_forward.1} parent=1 // pred_region
      _
    $region13: #{gruc_forward.1} parent=1 // pred_fallthru
      _
    // Predicated region
    $region14: #{gruc_forward.1} parent=1 // pred_check
      _
    $region15: #{gruc_forward.1} parent=1 // pred_check_branch
      %21 = sbr.rel (0) target = $region17
    $region16: #{gruc_forward.1} parent=1 // pred_region
      %23 = vsyncadd [#allocation4], 0
      %s24 = sshll.u32 %s3, 4
      %s25 = int_to_ptr.hbm [resolvable:$true] %s24
      %s26 = sshll.u32 [#allocation3], 4
      %s27 = int_to_ptr.vmem [resolvable:$true] %s26
      %32 = dma.hbm_to_vmem [thread:$0]  %s25, 6144, %s27, [#allocation4], 384, 384, 24
    $region17: #{gruc_forward.1} parent=1 // pred_fallthru
      _
    // Predicated region
    $region18: #{gruc_forward.1} parent=1 // pred_check
      _
    $region19: #{gruc_forward.1} parent=1 // pred_check_branch
      %34 = sbr.rel (0) target = $region21
    $region20: #{gruc_forward.1} parent=1 // pred_region
      _
    $region21: #{gruc_forward.1} parent=1 // pred_fallthru
      _
    // Predicated region
    $region22: #{gruc_forward.1} parent=1 // pred_check
      _
    $region23: #{gruc_forward.1} parent=1 // pred_check_branch
      %36 = sbr.rel (0) target = $region25
    $region24: #{gruc_forward.1} parent=1 // pred_region
      %38 = vsyncadd [#allocation6], 0
      %s39 = sshll.u32 %s5, 4
      %s40 = int_to_ptr.hbm [resolvable:$true] %s39
      %s41 = sshll.u32 [#allocation5], 4
      %s42 = int_to_ptr.vmem [resolvable:$true] %s41
      %47 = dma.hbm_to_vmem [thread:$0]  %s40, 2048, %s42, [#allocation6], 128, 128, 8
    $region25: #{gruc_forward.1} parent=1 // pred_fallthru
      _
    // Predicated region
    $region26: #{gruc_forward.1} parent=1 // pred_check
      _
    $region27: #{gruc_forward.1} parent=1 // pred_check_branch
      %49 = sbr.rel (0) target = $region29
    $region28: #{gruc_forward.1} parent=1 // pred_region
      _
    $region29: #{gruc_forward.1} parent=1 // pred_fallthru
      _
    // Predicated region
    $region30: #{gruc_forward.1} parent=1 // pred_check
      _
    $region31: #{gruc_forward.1} parent=1 // pred_check_branch
      %51 = sbr.rel (0) target = $region33
    $region32: #{gruc_forward.1} parent=1 // pred_region
      %53 = dma.done [#allocation4], 6144
    $region33: #{gruc_forward.1} parent=1 // pred_fallthru
      _
    // Predicated region
    $region34: #{gruc_forward.1} parent=1 // pred_check
      _
    $region35: #{gruc_forward.1} parent=1 // pred_check_branch
      %55 = sbr.rel (0) target = $region37
    $region36: #{gruc_forward.1} parent=1 // pred_region
      %57 = dma.done [#allocation6], 2048
    $region37: #{gruc_forward.1} parent=1 // pred_fallthru
      _
    %v58 = vld [vmem:[%s0] sm:$0xff]
    %v59 = vld [vmem:[%s0 + $0x8] sm:$0xff]
    %v60 = vld [vmem:[%s0 + $0x10] sm:$0xff]
    %v61 = vld [vmem:[%s0 + $0x18] sm:$0xff]
    %v62 = vld [vmem:[%s0 + $0x20] sm:$0xff]
    %v63 = vld [vmem:[%s0 + $0x28] sm:$0xff]
    %v64 = vld [vmem:[%s0 + $0x30] sm:$0xff]
    %v65 = vld [vmem:[%s0 + $0x38] sm:$0xff]
    %v66 = vld [vmem:[%s1] sm:$0xff]
    %v67 = vld [vmem:[%s1 + $0x8] sm:$0xff]
    %v68 = vld [vmem:[%s1 + $0x10] sm:$0xff]
    %v69 = vld [vmem:[%s1 + $0x18] sm:$0xff]
    %v70 = vld [vmem:[%s1 + $0x20] sm:$0xff]
    %v71 = vld [vmem:[%s1 + $0x28] sm:$0xff]
    %v72 = vld [vmem:[%s1 + $0x30] sm:$0x3f]
    %v73 = vld [vmem:[%s1 + $0x38] sm:$0x3f]
    %v74 = vld [vmem:[%s1 + $0x40] sm:$0x3f]
    %v75 = vld [vmem:[%s2] sm:$0x7]
    %v77 = vperm.slane %v75, 0
    %v78 = vperm.slane %v75, 1
    %v79 = vperm.slane %v75, 2
    %vm83 = vcmask 179200
    %v85 = vsel %vm83, %v58, 0
    %v88 = vsel %vm83, %v59, 0
    %v91 = vsel %vm83, %v60, 0
    %v94 = vsel %vm83, %v61, 0
    %v97 = vsel %vm83, %v62, 0
    %v100 = vsel %vm83, %v63, 0
    %v103 = vsel %vm83, %v64, 0
    %v106 = vsel %vm83, %v65, 0
    %vm108 = vcmask 1045504
    %v110 = vsel %vm108, %v72, 0
    %v113 = vsel %vm108, %v73, 0
    %v116 = vsel %vm108, %v74, 0
    %118 = vmatpush.msra.mxu0 0.0
    %119 = vmatpush.msra.mxu0 0.0
    %120 = vmatpush.msra.mxu0 0.0
    %121 = vmatpush.msra.mxu0 0.0
    %122 = vmatpush.msra.mxu0 0.0
    %123 = vmatpush.msra.mxu0 0.0
    %124 = vmatpush.msra.mxu0 0.0
    %125 = vmatpush.msra.mxu0 0.0
    %126 = vmatpush.msra.mxu0 0.0
    %127 = vmatpush.msra.mxu0 0.0
    %128 = vmatpush.msra.mxu0 0.0
    %129 = vmatpush.msra.mxu0 0.0
    %130 = vmatpush.msra.mxu0 0.0
    %131 = vmatpush.msra.mxu0 %v110
    %132 = vmatpush.msra.mxu0 %v69
    %133 = vmatpush.msra.mxu0 %v66
    %134 = vmatmul.f32.gmra.mxu0 %v85
    %v135 = vpop.f32.mrf.mxu0
    %v136 = vadd.f32 %v77, %v135
    %137 = vmatmul.f32.gmra.mxu0 %v88
    %v138 = vpop.f32.mrf.mxu0
    %v139 = vadd.f32 %v77, %v138
    %140 = vmatmul.f32.gmra.mxu0 %v91
    %v141 = vpop.f32.mrf.mxu0
    %v142 = vadd.f32 %v77, %v141
    %143 = vmatmul.f32.gmra.mxu0 %v94
    %v144 = vpop.f32.mrf.mxu0
    %v145 = vadd.f32 %v77, %v144
    %146 = vmatmul.f32.gmra.mxu0 %v97
    %v147 = vpop.f32.mrf.mxu0
    %v148 = vadd.f32 %v77, %v147
    %149 = vmatmul.f32.gmra.mxu0 %v100
    %v150 = vpop.f32.mrf.mxu0
    %v151 = vadd.f32 %v77, %v150
    %152 = vmatmul.f32.gmra.mxu0 %v103
    %v153 = vpop.f32.mrf.mxu0
    %v154 = vadd.f32 %v77, %v153
    %155 = vmatmul.f32.gmra.mxu0 %v106
    %v156 = vpop.f32.mrf.mxu0
    %v157 = vadd.f32 %v77, %v156
    %158 = vdwg.mxu0
    %159 = vmatpush.msra.mxu0 0.0
    %160 = vmatpush.msra.mxu0 0.0
    %161 = vmatpush.msra.mxu0 0.0
    %162 = vmatpush.msra.mxu0 0.0
    %163 = vmatpush.msra.mxu0 0.0
    %164 = vmatpush.msra.mxu0 0.0
    %165 = vmatpush.msra.mxu0 0.0
    %166 = vmatpush.msra.mxu0 0.0
    %167 = vmatpush.msra.mxu0 0.0
    %168 = vmatpush.msra.mxu0 0.0
    %169 = vmatpush.msra.mxu0 0.0
    %170 = vmatpush.msra.mxu0 0.0
    %171 = vmatpush.msra.mxu0 0.0
    %172 = vmatpush.msra.mxu0 %v113
    %173 = vmatpush.msra.mxu0 %v70
    %174 = vmatpush.msra.mxu0 %v67
    %175 = vmatmul.f32.gmra.mxu0 %v85
    %v176 = vpop.f32.mrf.mxu0
    %v177 = vadd.f32 %v78, %v176
    %178 = vmatmul.f32.gmra.mxu0 %v88
    %v179 = vpop.f32.mrf.mxu0
    %v180 = vadd.f32 %v78, %v179
    %181 = vmatmul.f32.gmra.mxu0 %v91
    %v182 = vpop.f32.mrf.mxu0
    %v183 = vadd.f32 %v78, %v182
    %184 = vmatmul.f32.gmra.mxu0 %v94
    %v185 = vpop.f32.mrf.mxu0
    %v186 = vadd.f32 %v78, %v185
    %187 = vmatmul.f32.gmra.mxu0 %v97
    %v188 = vpop.f32.mrf.mxu0
    %v189 = vadd.f32 %v78, %v188
    %190 = vmatmul.f32.gmra.mxu0 %v100
    %v191 = vpop.f32.mrf.mxu0
    %v192 = vadd.f32 %v78, %v191
    %193 = vmatmul.f32.gmra.mxu0 %v103
    %v194 = vpop.f32.mrf.mxu0
    %v195 = vadd.f32 %v78, %v194
    %196 = vmatmul.f32.gmra.mxu0 %v106
    %v197 = vpop.f32.mrf.mxu0
    %v198 = vadd.f32 %v78, %v197
    %199 = vdwg.mxu0
    %200 = vmatpush.msra.mxu0 0.0
    %201 = vmatpush.msra.mxu0 0.0
    %202 = vmatpush.msra.mxu0 0.0
    %203 = vmatpush.msra.mxu0 0.0
    %204 = vmatpush.msra.mxu0 0.0
    %205 = vmatpush.msra.mxu0 0.0
    %206 = vmatpush.msra.mxu0 0.0
    %207 = vmatpush.msra.mxu0 0.0
    %208 = vmatpush.msra.mxu0 0.0
    %209 = vmatpush.msra.mxu0 0.0
    %210 = vmatpush.msra.mxu0 0.0
    %211 = vmatpush.msra.mxu0 0.0
    %212 = vmatpush.msra.mxu0 0.0
    %213 = vmatpush.msra.mxu0 %v116
    %214 = vmatpush.msra.mxu0 %v71
    %215 = vmatpush.msra.mxu0 %v68
    %216 = vmatmul.f32.gmra.mxu0 %v85
    %v217 = vpop.f32.mrf.mxu0
    %v218 = vadd.f32 %v79, %v217
    %219 = vmatmul.f32.gmra.mxu0 %v88
    %v220 = vpop.f32.mrf.mxu0
    %v221 = vadd.f32 %v79, %v220
    %222 = vmatmul.f32.gmra.mxu0 %v91
    %v223 = vpop.f32.mrf.mxu0
    %v224 = vadd.f32 %v79, %v223
    %225 = vmatmul.f32.gmra.mxu0 %v94
    %v226 = vpop.f32.mrf.mxu0
    %v227 = vadd.f32 %v79, %v226
    %228 = vmatmul.f32.gmra.mxu0 %v97
    %v229 = vpop.f32.mrf.mxu0
    %v230 = vadd.f32 %v79, %v229
    %231 = vmatmul.f32.gmra.mxu0 %v100
    %v232 = vpop.f32.mrf.mxu0
    %v233 = vadd.f32 %v79, %v232
    %234 = vmatmul.f32.gmra.mxu0 %v103
    %v235 = vpop.f32.mrf.mxu0
    %v236 = vadd.f32 %v79, %v235
    %237 = vmatmul.f32.gmra.mxu0 %v106
    %v238 = vpop.f32.mrf.mxu0
    %v239 = vadd.f32 %v79, %v238
    %240 = vdwg.mxu0
    %241 = vst [vmem:[#allocation2] sm:$0xff] %v136
    %242 = vst [vmem:[#allocation2 + $0x8] sm:$0xff] %v177
    %243 = vst [vmem:[#allocation2 + $0x10] sm:$0xff] %v218
    %244 = vst [vmem:[#allocation2 + $0x18] sm:$0xff] %v139
    %245 = vst [vmem:[#allocation2 + $0x20] sm:$0xff] %v180
    %246 = vst [vmem:[#allocation2 + $0x28] sm:$0xff] %v221
    %247 = vst [vmem:[#allocation2 + $0x30] sm:$0xff] %v142
    %248 = vst [vmem:[#allocation2 + $0x38] sm:$0xff] %v183
    %249 = vst [vmem:[#allocation2 + $0x40] sm:$0xff] %v224
    %250 = vst [vmem:[#allocation2 + $0x48] sm:$0xff] %v145
    %251 = vst [vmem:[#allocation2 + $0x50] sm:$0xff] %v186
    %252 = vst [vmem:[#allocation2 + $0x58] sm:$0xff] %v227
    %253 = vst [vmem:[#allocation2 + $0x60] sm:$0xff] %v148
    %254 = vst [vmem:[#allocation2 + $0x68] sm:$0xff] %v189
    %255 = vst [vmem:[#allocation2 + $0x70] sm:$0xff] %v230
    %256 = vst [vmem:[#allocation2 + $0x78] sm:$0xff] %v151
    %257 = vst [vmem:[#allocation2 + $0x80] sm:$0xff] %v192
    %258 = vst [vmem:[#allocation2 + $0x88] sm:$0xff] %v233
    %259 = vst [vmem:[#allocation2 + $0x90] sm:$0xff] %v154
    %260 = vst [vmem:[#allocation2 + $0x98] sm:$0xff] %v195
    %261 = vst [vmem:[#allocation2 + $0xa0] sm:$0xff] %v236
    %262 = vst [vmem:[#allocation2 + $0xa8] sm:$0xff] %v157
    %263 = vst [vmem:[#allocation2 + $0xb0] sm:$0xff] %v198
    %264 = vst [vmem:[#allocation2 + $0xb8] sm:$0xff] %v239
    %v265 = vld [vmem:[#allocation3] sm:$0xff]
    %v266 = vld [vmem:[#allocation3 + $0x8] sm:$0xff]
    %v267 = vld [vmem:[#allocation3 + $0x10] sm:$0xff]
    %v268 = vld [vmem:[#allocation3 + $0x18] sm:$0xff]
    %v269 = vld [vmem:[#allocation3 + $0x20] sm:$0xff]
    %v270 = vld [vmem:[#allocation3 + $0x28] sm:$0xff]
    %v271 = vld [vmem:[#allocation3 + $0x30] sm:$0xff]
    %v272 = vld [vmem:[#allocation3 + $0x38] sm:$0xff]
    %v273 = vld [vmem:[#allocation3 + $0x40] sm:$0xff]
    %v274 = vld [vmem:[#allocation3 + $0x48] sm:$0xff]
    %v275 = vld [vmem:[#allocation3 + $0x50] sm:$0xff]
    %v276 = vld [vmem:[#allocation3 + $0x58] sm:$0xff]
    %v277 = vld [vmem:[#allocation3 + $0x60] sm:$0xff]
    %v278 = vld [vmem:[#allocation3 + $0x68] sm:$0xff]
    %v279 = vld [vmem:[#allocation3 + $0x70] sm:$0xff]
    %v280 = vld [vmem:[#allocation3 + $0x78] sm:$0xff]
    %v281 = vld [vmem:[#allocation3 + $0x80] sm:$0xff]
    %v282 = vld [vmem:[#allocation3 + $0x88] sm:$0xff]
    %v283 = vld [vmem:[#allocation3 + $0x90] sm:$0xff]
    %v284 = vld [vmem:[#allocation3 + $0x98] sm:$0xff]
    %v285 = vld [vmem:[#allocation3 + $0xa0] sm:$0xff]
    %v286 = vld [vmem:[#allocation3 + $0xa8] sm:$0xff]
    %v287 = vld [vmem:[#allocation3 + $0xb0] sm:$0xff]
    %v288 = vld [vmem:[#allocation3 + $0xb8] sm:$0xff]
    %v289 = vld [vmem:[#allocation3 + $0xc0] sm:$0xff]
    %v290 = vld [vmem:[#allocation3 + $0xc8] sm:$0xff]
    %v291 = vld [vmem:[#allocation3 + $0xd0] sm:$0xff]
    %v292 = vld [vmem:[#allocation3 + $0xd8] sm:$0xff]
    %v293 = vld [vmem:[#allocation3 + $0xe0] sm:$0xff]
    %v294 = vld [vmem:[#allocation3 + $0xe8] sm:$0xff]
    %v295 = vld [vmem:[#allocation3 + $0xf0] sm:$0xff]
    %v296 = vld [vmem:[#allocation3 + $0xf8] sm:$0xff]
    %v297 = vld [vmem:[#allocation3 + $0x100] sm:$0xff]
    %v298 = vld [vmem:[#allocation3 + $0x108] sm:$0xff]
    %v299 = vld [vmem:[#allocation3 + $0x110] sm:$0xff]
    %v300 = vld [vmem:[#allocation3 + $0x118] sm:$0xff]
    %v301 = vld [vmem:[#allocation3 + $0x120] sm:$0xff]
    %v302 = vld [vmem:[#allocation3 + $0x128] sm:$0xff]
    %v303 = vld [vmem:[#allocation3 + $0x130] sm:$0xff]
    %v304 = vld [vmem:[#allocation3 + $0x138] sm:$0xff]
    %v305 = vld [vmem:[#allocation3 + $0x140] sm:$0xff]
    %v306 = vld [vmem:[#allocation3 + $0x148] sm:$0xff]
    %v307 = vld [vmem:[#allocation3 + $0x150] sm:$0xff]
    %v308 = vld [vmem:[#allocation3 + $0x158] sm:$0xff]
    %v309 = vld [vmem:[#allocation3 + $0x160] sm:$0xff]
    %v310 = vld [vmem:[#allocation3 + $0x168] sm:$0xff]
    %v311 = vld [vmem:[#allocation3 + $0x170] sm:$0xff]
    %v312 = vld [vmem:[#allocation3 + $0x178] sm:$0xff]
    %v313 = vld [vmem:[%s4] sm:$0x1]
    %v314 = vld [vmem:[#allocation2] sm:$0xff]
    %v315 = vld [vmem:[#allocation2 + $0x8] sm:$0xff]
    %v316 = vld [vmem:[#allocation2 + $0x10] sm:$0xff]
    %317 = vmatpush.msra.mxu0 %v310
    %318 = vmatpush.msra.mxu0 %v307
    %319 = vmatpush.msra.mxu0 %v304
    %320 = vmatpush.msra.mxu0 %v301
    %321 = vmatpush.msra.mxu0 %v298
    %322 = vmatpush.msra.mxu0 %v295
    %323 = vmatpush.msra.mxu0 %v292
    %324 = vmatpush.msra.mxu0 %v289
    %325 = vmatpush.msra.mxu0 %v286
    %326 = vmatpush.msra.mxu0 %v283
    %327 = vmatpush.msra.mxu0 %v280
    %328 = vmatpush.msra.mxu0 %v277
    %329 = vmatpush.msra.mxu0 %v274
    %330 = vmatpush.msra.mxu0 %v271
    %331 = vmatpush.msra.mxu0 %v268
    %332 = vmatpush.msra.mxu0 %v265
    %333 = vmatmul.f32.gmra.mxu0 0.0
    %v334 = vpop.f32.mrf.mxu0
    %v335 = vadd.f32 0.0, %v334
    %336 = vdwg.mxu0
    %337 = vmatpush.msra.mxu0 %v311
    %338 = vmatpush.msra.mxu0 %v308
    %339 = vmatpush.msra.mxu0 %v305
    %340 = vmatpush.msra.mxu0 %v302
    %341 = vmatpush.msra.mxu0 %v299
    %342 = vmatpush.msra.mxu0 %v296
    %343 = vmatpush.msra.mxu0 %v293
    %344 = vmatpush.msra.mxu0 %v290
    %345 = vmatpush.msra.mxu0 %v287
    %346 = vmatpush.msra.mxu0 %v284
    %347 = vmatpush.msra.mxu0 %v281
    %348 = vmatpush.msra.mxu0 %v278
    %349 = vmatpush.msra.mxu0 %v275
    %350 = vmatpush.msra.mxu0 %v272
    %351 = vmatpush.msra.mxu0 %v269
    %352 = vmatpush.msra.mxu0 %v266
    %353 = vmatmul.f32.gmra.mxu0 0.0
    %v354 = vpop.f32.mrf.mxu0
    %v355 = vadd.f32 0.0, %v354
    %356 = vdwg.mxu0
    %357 = vmatpush.msra.mxu0 %v312
    %358 = vmatpush.msra.mxu0 %v309
    %359 = vmatpush.msra.mxu0 %v306
    %360 = vmatpush.msra.mxu0 %v303
    %361 = vmatpush.msra.mxu0 %v300
    %362 = vmatpush.msra.mxu0 %v297
    %363 = vmatpush.msra.mxu0 %v294
    %364 = vmatpush.msra.mxu0 %v291
    %365 = vmatpush.msra.mxu0 %v288
    %366 = vmatpush.msra.mxu0 %v285
    %367 = vmatpush.msra.mxu0 %v282
    %368 = vmatpush.msra.mxu0 %v279
    %369 = vmatpush.msra.mxu0 %v276
    %370 = vmatpush.msra.mxu0 %v273
    %371 = vmatpush.msra.mxu0 %v270
    %372 = vmatpush.msra.mxu0 %v267
    %373 = vmatmul.f32.gmra.mxu0 0.0
    %v374 = vpop.f32.mrf.mxu0
    %v375 = vadd.f32 0.0, %v374
    %376 = vdwg.mxu0
    %v377 = vadd.f32 %v314, %v335
    %v378 = vadd.f32 %v315, %v355
    %v379 = vxor.u32 %v377, 2147483648
    %v380 = vxor.u32 %v378, 2147483648
    %v381 = vmul.f32 %v379, 1.442695
    %v382 = vpow.pop %v381
    %v383 = vmul.f32 %v380, 1.442695
    %v384 = vpow.pop %v383
    %v385 = vadd.f32 %v382, 1.0
    %v386 = vadd.f32 %v384, 1.0
    %v387 = vrcp.pop %v385
    %v388 = vmul.f32 %v385, %v387
    %v389 = vsub.f32 1.0, %v388
    %v390 = vmul.f32 %v387, %v389
    %v391 = vadd.f32 %v387, %v390
    %vm392 = vweird.f32 %v385
    %vm393 = vweird.f32 %v387
    %vm394 = vmor %vm392, %vm393
    %v395 = vsel %vm394, %v387, %v391
    %v396 = vand.u32 2147483647, %v385
    %vm397 = vcmp.eq.f32.partialorder %v396, 8.507059e+37
    %v398 = vand.u32 %v385, 2147483648
    %v399 = vor.u32 1.1754944e-38, %v398
    %v400 = vsel %vm397, %v399, %v395
    %v401 = vmul.f32 1.0, %v400
    %v402 = vrcp.pop %v386
    %v403 = vmul.f32 %v386, %v402
    %v404 = vsub.f32 1.0, %v403
    %v405 = vmul.f32 %v402, %v404
    %v406 = vadd.f32 %v402, %v405
    %vm407 = vweird.f32 %v386
    %vm408 = vweird.f32 %v402
    %vm409 = vmor %vm407, %vm408
    %v410 = vsel %vm409, %v402, %v406
    %v411 = vand.u32 2147483647, %v386
    %vm412 = vcmp.eq.f32.partialorder %v411, 8.507059e+37
    %v413 = vand.u32 %v386, 2147483648
    %v414 = vor.u32 1.1754944e-38, %v413
    %v415 = vsel %vm412, %v414, %v410
    %v416 = vmul.f32 1.0, %v415
    %v418 = vperm.slane %v313, 0
    %v420 = vadd.f32 %v375, %v418
    %v421 = vmul.f32 %v401, %v420
    %v422 = vadd.f32 %v316, %v421
    %v423 = vtanh.pop %v422
    %v424 = vsub.f32 0.0, %v423
    %v425 = vmul.f32 %v416, %v424
    %v426 = vadd.f32 %v423, %v425
    %v427 = vld [vmem:[#allocation2 + $0x18] sm:$0xff]
    %v428 = vld [vmem:[#allocation2 + $0x20] sm:$0xff]
    %v429 = vld [vmem:[#allocation2 + $0x28] sm:$0xff]
    %430 = vmatpush.msra.mxu0 %v310
    %431 = vmatpush.msra.mxu0 %v307
    %432 = vmatpush.msra.mxu0 %v304
    %433 = vmatpush.msra.mxu0 %v301
    %434 = vmatpush.msra.mxu0 %v298
    %435 = vmatpush.msra.mxu0 %v295
    %436 = vmatpush.msra.mxu0 %v292
    %437 = vmatpush.msra.mxu0 %v289
    %438 = vmatpush.msra.mxu0 %v286
    %439 = vmatpush.msra.mxu0 %v283
    %440 = vmatpush.msra.mxu0 %v280
    %441 = vmatpush.msra.mxu0 %v277
    %442 = vmatpush.msra.mxu0 %v274
    %443 = vmatpush.msra.mxu0 %v271
    %444 = vmatpush.msra.mxu0 %v268
    %445 = vmatpush.msra.mxu0 %v265
    %446 = vmatmul.f32.gmra.mxu0 %v426
    %v447 = vpop.f32.mrf.mxu0
    %v448 = vadd.f32 0.0, %v447
    %449 = vdwg.mxu0
    %450 = vmatpush.msra.mxu0 %v311
    %451 = vmatpush.msra.mxu0 %v308
    %452 = vmatpush.msra.mxu0 %v305
    %453 = vmatpush.msra.mxu0 %v302
    %454 = vmatpush.msra.mxu0 %v299
    %455 = vmatpush.msra.mxu0 %v296
    %456 = vmatpush.msra.mxu0 %v293
    %457 = vmatpush.msra.mxu0 %v290
    %458 = vmatpush.msra.mxu0 %v287
    %459 = vmatpush.msra.mxu0 %v284
    %460 = vmatpush.msra.mxu0 %v281
    %461 = vmatpush.msra.mxu0 %v278
    %462 = vmatpush.msra.mxu0 %v275
    %463 = vmatpush.msra.mxu0 %v272
    %464 = vmatpush.msra.mxu0 %v269
    %465 = vmatpush.msra.mxu0 %v266
    %466 = vmatmul.f32.gmra.mxu0 %v426
    %v467 = vpop.f32.mrf.mxu0
    %v468 = vadd.f32 0.0, %v467
    %469 = vdwg.mxu0
    %470 = vmatpush.msra.mxu0 %v312
    %471 = vmatpush.msra.mxu0 %v309
    %472 = vmatpush.msra.mxu0 %v306
    %473 = vmatpush.msra.mxu0 %v303
    %474 = vmatpush.msra.mxu0 %v300
    %475 = vmatpush.msra.mxu0 %v297
    %476 = vmatpush.msra.mxu0 %v294
    %477 = vmatpush.msra.mxu0 %v291
    %478 = vmatpush.msra.mxu0 %v288
    %479 = vmatpush.msra.mxu0 %v285
    %480 = vmatpush.msra.mxu0 %v282
    %481 = vmatpush.msra.mxu0 %v279
    %482 = vmatpush.msra.mxu0 %v276
    %483 = vmatpush.msra.mxu0 %v273
    %484 = vmatpush.msra.mxu0 %v270
    %485 = vmatpush.msra.mxu0 %v267
    %486 = vmatmul.f32.gmra.mxu0 %v426
    %v487 = vpop.f32.mrf.mxu0
    %v488 = vadd.f32 0.0, %v487
    %489 = vdwg.mxu0
    %v490 = vadd.f32 %v427, %v448
    %v491 = vadd.f32 %v428, %v468
    %v492 = vxor.u32 %v490, 2147483648
    %v493 = vxor.u32 %v491, 2147483648
    %v494 = vmul.f32 %v492, 1.442695
    %v495 = vpow.pop %v494
    %v496 = vmul.f32 %v493, 1.442695
    %v497 = vpow.pop %v496
    %v498 = vadd.f32 %v495, 1.0
    %v499 = vadd.f32 %v497, 1.0
    %v500 = vrcp.pop %v498
    %v501 = vmul.f32 %v498, %v500
    %v502 = vsub.f32 1.0, %v501
    %v503 = vmul.f32 %v500, %v502
    %v504 = vadd.f32 %v500, %v503
    %vm505 = vweird.f32 %v498
    %vm506 = vweird.f32 %v500
    %vm507 = vmor %vm505, %vm506
    %v508 = vsel %vm507, %v500, %v504
    %v509 = vand.u32 2147483647, %v498
    %vm510 = vcmp.eq.f32.partialorder %v509, 8.507059e+37
    %v511 = vand.u32 %v498, 2147483648
    %v512 = vor.u32 1.1754944e-38, %v511
    %v513 = vsel %vm510, %v512, %v508
    %v514 = vmul.f32 1.0, %v513
    %v515 = vrcp.pop %v499
    %v516 = vmul.f32 %v499, %v515
    %v517 = vsub.f32 1.0, %v516
    %v518 = vmul.f32 %v515, %v517
    %v519 = vadd.f32 %v515, %v518
    %vm520 = vweird.f32 %v499
    %vm521 = vweird.f32 %v515
    %vm522 = vmor %vm520, %vm521
    %v523 = vsel %vm522, %v515, %v519
    %v524 = vand.u32 2147483647, %v499
    %vm525 = vcmp.eq.f32.partialorder %v524, 8.507059e+37
    %v526 = vand.u32 %v499, 2147483648
    %v527 = vor.u32 1.1754944e-38, %v526
    %v528 = vsel %vm525, %v527, %v523
    %v529 = vmul.f32 1.0, %v528
    %v530 = vadd.f32 %v488, %v418
    %v531 = vmul.f32 %v514, %v530
    %v532 = vadd.f32 %v429, %v531
    %v533 = vtanh.pop %v532
    %v534 = vsub.f32 %v426, %v533
    %v535 = vmul.f32 %v529, %v534
    %v536 = vadd.f32 %v533, %v535
    %v537 = vld [vmem:[#allocation2 + $0x30] sm:$0xff]
    %v538 = vld [vmem:[#allocation2 + $0x38] sm:$0xff]
    %v539 = vld [vmem:[#allocation2 + $0x40] sm:$0xff]
    %540 = vmatpush.msra.mxu0 %v310
    %541 = vmatpush.msra.mxu0 %v307
    %542 = vmatpush.msra.mxu0 %v304
    %543 = vmatpush.msra.mxu0 %v301
    %544 = vmatpush.msra.mxu0 %v298
    %545 = vmatpush.msra.mxu0 %v295
    %546 = vmatpush.msra.mxu0 %v292
    %547 = vmatpush.msra.mxu0 %v289
    %548 = vmatpush.msra.mxu0 %v286
    %549 = vmatpush.msra.mxu0 %v283
    %550 = vmatpush.msra.mxu0 %v280
    %551 = vmatpush.msra.mxu0 %v277
    %552 = vmatpush.msra.mxu0 %v274
    %553 = vmatpush.msra.mxu0 %v271
    %554 = vmatpush.msra.mxu0 %v268
    %555 = vmatpush.msra.mxu0 %v265
    %556 = vmatmul.f32.gmra.mxu0 %v536
    %v557 = vpop.f32.mrf.mxu0
    %v558 = vadd.f32 0.0, %v557
    %559 = vdwg.mxu0
    %560 = vmatpush.msra.mxu0 %v311
    %561 = vmatpush.msra.mxu0 %v308
    %562 = vmatpush.msra.mxu0 %v305
    %563 = vmatpush.msra.mxu0 %v302
    %564 = vmatpush.msra.mxu0 %v299
    %565 = vmatpush.msra.mxu0 %v296
    %566 = vmatpush.msra.mxu0 %v293
    %567 = vmatpush.msra.mxu0 %v290
    %568 = vmatpush.msra.mxu0 %v287
    %569 = vmatpush.msra.mxu0 %v284
    %570 = vmatpush.msra.mxu0 %v281
    %571 = vmatpush.msra.mxu0 %v278
    %572 = vmatpush.msra.mxu0 %v275
    %573 = vmatpush.msra.mxu0 %v272
    %574 = vmatpush.msra.mxu0 %v269
    %575 = vmatpush.msra.mxu0 %v266
    %576 = vmatmul.f32.gmra.mxu0 %v536
    %v577 = vpop.f32.mrf.mxu0
    %v578 = vadd.f32 0.0, %v577
    %579 = vdwg.mxu0
    %580 = vmatpush.msra.mxu0 %v312
    %581 = vmatpush.msra.mxu0 %v309
    %582 = vmatpush.msra.mxu0 %v306
    %583 = vmatpush.msra.mxu0 %v303
    %584 = vmatpush.msra.mxu0 %v300
    %585 = vmatpush.msra.mxu0 %v297
    %586 = vmatpush.msra.mxu0 %v294
    %587 = vmatpush.msra.mxu0 %v291
    %588 = vmatpush.msra.mxu0 %v288
    %589 = vmatpush.msra.mxu0 %v285
    %590 = vmatpush.msra.mxu0 %v282
    %591 = vmatpush.msra.mxu0 %v279
    %592 = vmatpush.msra.mxu0 %v276
    %593 = vmatpush.msra.mxu0 %v273
    %594 = vmatpush.msra.mxu0 %v270
    %595 = vmatpush.msra.mxu0 %v267
    %596 = vmatmul.f32.gmra.mxu0 %v536
    %v597 = vpop.f32.mrf.mxu0
    %v598 = vadd.f32 0.0, %v597
    %599 = vdwg.mxu0
    %v600 = vadd.f32 %v537, %v558
    %v601 = vadd.f32 %v538, %v578
    %v602 = vxor.u32 %v600, 2147483648
    %v603 = vxor.u32 %v601, 2147483648
    %v604 = vmul.f32 %v602, 1.442695
    %v605 = vpow.pop %v604
    %v606 = vmul.f32 %v603, 1.442695
    %v607 = vpow.pop %v606
    %v608 = vadd.f32 %v605, 1.0
    %v609 = vadd.f32 %v607, 1.0
    %v610 = vrcp.pop %v608
    %v611 = vmul.f32 %v608, %v610
    %v612 = vsub.f32 1.0, %v611
    %v613 = vmul.f32 %v610, %v612
    %v614 = vadd.f32 %v610, %v613
    %vm615 = vweird.f32 %v608
    %vm616 = vweird.f32 %v610
    %vm617 = vmor %vm615, %vm616
    %v618 = vsel %vm617, %v610, %v614
    %v619 = vand.u32 2147483647, %v608
    %vm620 = vcmp.eq.f32.partialorder %v619, 8.507059e+37
    %v621 = vand.u32 %v608, 2147483648
    %v622 = vor.u32 1.1754944e-38, %v621
    %v623 = vsel %vm620, %v622, %v618
    %v624 = vmul.f32 1.0, %v623
    %v625 = vrcp.pop %v609
    %v626 = vmul.f32 %v609, %v625
    %v627 = vsub.f32 1.0, %v626
    %v628 = vmul.f32 %v625, %v627
    %v629 = vadd.f32 %v625, %v628
    %vm630 = vweird.f32 %v609
    %vm631 = vweird.f32 %v625
    %vm632 = vmor %vm630, %vm631
    %v633 = vsel %vm632, %v625, %v629
    %v634 = vand.u32 2147483647, %v609
    %vm635 = vcmp.eq.f32.partialorder %v634, 8.507059e+37
    %v636 = vand.u32 %v609, 2147483648
    %v637 = vor.u32 1.1754944e-38, %v636
    %v638 = vsel %vm635, %v637, %v633
    %v639 = vmul.f32 1.0, %v638
    %v640 = vadd.f32 %v598, %v418
    %v641 = vmul.f32 %v624, %v640
    %v642 = vadd.f32 %v539, %v641
    %v643 = vtanh.pop %v642
    %v644 = vsub.f32 %v536, %v643
    %v645 = vmul.f32 %v639, %v644
    %v646 = vadd.f32 %v643, %v645
    %v647 = vld [vmem:[#allocation2 + $0x48] sm:$0xff]
    %v648 = vld [vmem:[#allocation2 + $0x50] sm:$0xff]
    %v649 = vld [vmem:[#allocation2 + $0x58] sm:$0xff]
    %650 = vmatpush.msra.mxu0 %v310
    %651 = vmatpush.msra.mxu0 %v307
    %652 = vmatpush.msra.mxu0 %v304
    %653 = vmatpush.msra.mxu0 %v301
    %654 = vmatpush.msra.mxu0 %v298
    %655 = vmatpush.msra.mxu0 %v295
    %656 = vmatpush.msra.mxu0 %v292
    %657 = vmatpush.msra.mxu0 %v289
    %658 = vmatpush.msra.mxu0 %v286
    %659 = vmatpush.msra.mxu0 %v283
    %660 = vmatpush.msra.mxu0 %v280
    %661 = vmatpush.msra.mxu0 %v277
    %662 = vmatpush.msra.mxu0 %v274
    %663 = vmatpush.msra.mxu0 %v271
    %664 = vmatpush.msra.mxu0 %v268
    %665 = vmatpush.msra.mxu0 %v265
    %666 = vmatmul.f32.gmra.mxu0 %v646
    %v667 = vpop.f32.mrf.mxu0
    %v668 = vadd.f32 0.0, %v667
    %669 = vdwg.mxu0
    %670 = vmatpush.msra.mxu0 %v311
    %671 = vmatpush.msra.mxu0 %v308
    %672 = vmatpush.msra.mxu0 %v305
    %673 = vmatpush.msra.mxu0 %v302
    %674 = vmatpush.msra.mxu0 %v299
    %675 = vmatpush.msra.mxu0 %v296
    %676 = vmatpush.msra.mxu0 %v293
    %677 = vmatpush.msra.mxu0 %v290
    %678 = vmatpush.msra.mxu0 %v287
    %679 = vmatpush.msra.mxu0 %v284
    %680 = vmatpush.msra.mxu0 %v281
    %681 = vmatpush.msra.mxu0 %v278
    %682 = vmatpush.msra.mxu0 %v275
    %683 = vmatpush.msra.mxu0 %v272
    %684 = vmatpush.msra.mxu0 %v269
    %685 = vmatpush.msra.mxu0 %v266
    %686 = vmatmul.f32.gmra.mxu0 %v646
    %v687 = vpop.f32.mrf.mxu0
    %v688 = vadd.f32 0.0, %v687
    %689 = vdwg.mxu0
    %690 = vmatpush.msra.mxu0 %v312
    %691 = vmatpush.msra.mxu0 %v309
    %692 = vmatpush.msra.mxu0 %v306
    %693 = vmatpush.msra.mxu0 %v303
    %694 = vmatpush.msra.mxu0 %v300
    %695 = vmatpush.msra.mxu0 %v297
    %696 = vmatpush.msra.mxu0 %v294
    %697 = vmatpush.msra.mxu0 %v291
    %698 = vmatpush.msra.mxu0 %v288
    %699 = vmatpush.msra.mxu0 %v285
    %700 = vmatpush.msra.mxu0 %v282
    %701 = vmatpush.msra.mxu0 %v279
    %702 = vmatpush.msra.mxu0 %v276
    %703 = vmatpush.msra.mxu0 %v273
    %704 = vmatpush.msra.mxu0 %v270
    %705 = vmatpush.msra.mxu0 %v267
    %706 = vmatmul.f32.gmra.mxu0 %v646
    %v707 = vpop.f32.mrf.mxu0
    %v708 = vadd.f32 0.0, %v707
    %709 = vdwg.mxu0
    %v710 = vadd.f32 %v647, %v668
    %v711 = vadd.f32 %v648, %v688
    %v712 = vxor.u32 %v710, 2147483648
    %v713 = vxor.u32 %v711, 2147483648
    %v714 = vmul.f32 %v712, 1.442695
    %v715 = vpow.pop %v714
    %v716 = vmul.f32 %v713, 1.442695
    %v717 = vpow.pop %v716
    %v718 = vadd.f32 %v715, 1.0
    %v719 = vadd.f32 %v717, 1.0
    %v720 = vrcp.pop %v718
    %v721 = vmul.f32 %v718, %v720
    %v722 = vsub.f32 1.0, %v721
    %v723 = vmul.f32 %v720, %v722
    %v724 = vadd.f32 %v720, %v723
    %vm725 = vweird.f32 %v718
    %vm726 = vweird.f32 %v720
    %vm727 = vmor %vm725, %vm726
    %v728 = vsel %vm727, %v720, %v724
    %v729 = vand.u32 2147483647, %v718
    %vm730 = vcmp.eq.f32.partialorder %v729, 8.507059e+37
    %v731 = vand.u32 %v718, 2147483648
    %v732 = vor.u32 1.1754944e-38, %v731
    %v733 = vsel %vm730, %v732, %v728
    %v734 = vmul.f32 1.0, %v733
    %v735 = vrcp.pop %v719
    %v736 = vmul.f32 %v719, %v735
    %v737 = vsub.f32 1.0, %v736
    %v738 = vmul.f32 %v735, %v737
    %v739 = vadd.f32 %v735, %v738
    %vm740 = vweird.f32 %v719
    %vm741 = vweird.f32 %v735
    %vm742 = vmor %vm740, %vm741
    %v743 = vsel %vm742, %v735, %v739
    %v744 = vand.u32 2147483647, %v719
    %vm745 = vcmp.eq.f32.partialorder %v744, 8.507059e+37
    %v746 = vand.u32 %v719, 2147483648
    %v747 = vor.u32 1.1754944e-38, %v746
    %v748 = vsel %vm745, %v747, %v743
    %v749 = vmul.f32 1.0, %v748
    %v750 = vadd.f32 %v708, %v418
    %v751 = vmul.f32 %v734, %v750
    %v752 = vadd.f32 %v649, %v751
    %v753 = vtanh.pop %v752
    %v754 = vsub.f32 %v646, %v753
    %v755 = vmul.f32 %v749, %v754
    %v756 = vadd.f32 %v753, %v755
    %v757 = vld [vmem:[#allocation2 + $0x60] sm:$0xff]
    %v758 = vld [vmem:[#allocation2 + $0x68] sm:$0xff]
    %v759 = vld [vmem:[#allocation2 + $0x70] sm:$0xff]
    %760 = vmatpush.msra.mxu0 %v310
    %761 = vmatpush.msra.mxu0 %v307
    %762 = vmatpush.msra.mxu0 %v304
    %763 = vmatpush.msra.mxu0 %v301
    %764 = vmatpush.msra.mxu0 %v298
    %765 = vmatpush.msra.mxu0 %v295
    %766 = vmatpush.msra.mxu0 %v292
    %767 = vmatpush.msra.mxu0 %v289
    %768 = vmatpush.msra.mxu0 %v286
    %769 = vmatpush.msra.mxu0 %v283
    %770 = vmatpush.msra.mxu0 %v280
    %771 = vmatpush.msra.mxu0 %v277
    %772 = vmatpush.msra.mxu0 %v274
    %773 = vmatpush.msra.mxu0 %v271
    %774 = vmatpush.msra.mxu0 %v268
    %775 = vmatpush.msra.mxu0 %v265
    %776 = vmatmul.f32.gmra.mxu0 %v756
    %v777 = vpop.f32.mrf.mxu0
    %v778 = vadd.f32 0.0, %v777
    %779 = vdwg.mxu0
    %780 = vmatpush.msra.mxu0 %v311
    %781 = vmatpush.msra.mxu0 %v308
    %782 = vmatpush.msra.mxu0 %v305
    %783 = vmatpush.msra.mxu0 %v302
    %784 = vmatpush.msra.mxu0 %v299
    %785 = vmatpush.msra.mxu0 %v296
    %786 = vmatpush.msra.mxu0 %v293
    %787 = vmatpush.msra.mxu0 %v290
    %788 = vmatpush.msra.mxu0 %v287
    %789 = vmatpush.msra.mxu0 %v284
    %790 = vmatpush.msra.mxu0 %v281
    %791 = vmatpush.msra.mxu0 %v278
    %792 = vmatpush.msra.mxu0 %v275
    %793 = vmatpush.msra.mxu0 %v272
    %794 = vmatpush.msra.mxu0 %v269
    %795 = vmatpush.msra.mxu0 %v266
    %796 = vmatmul.f32.gmra.mxu0 %v756
    %v797 = vpop.f32.mrf.mxu0
    %v798 = vadd.f32 0.0, %v797
    %799 = vdwg.mxu0
    %800 = vmatpush.msra.mxu0 %v312
    %801 = vmatpush.msra.mxu0 %v309
    %802 = vmatpush.msra.mxu0 %v306
    %803 = vmatpush.msra.mxu0 %v303
    %804 = vmatpush.msra.mxu0 %v300
    %805 = vmatpush.msra.mxu0 %v297
    %806 = vmatpush.msra.mxu0 %v294
    %807 = vmatpush.msra.mxu0 %v291
    %808 = vmatpush.msra.mxu0 %v288
    %809 = vmatpush.msra.mxu0 %v285
    %810 = vmatpush.msra.mxu0 %v282
    %811 = vmatpush.msra.mxu0 %v279
    %812 = vmatpush.msra.mxu0 %v276
    %813 = vmatpush.msra.mxu0 %v273
    %814 = vmatpush.msra.mxu0 %v270
    %815 = vmatpush.msra.mxu0 %v267
    %816 = vmatmul.f32.gmra.mxu0 %v756
    %v817 = vpop.f32.mrf.mxu0
    %v818 = vadd.f32 0.0, %v817
    %819 = vdwg.mxu0
    %v820 = vadd.f32 %v757, %v778
    %v821 = vadd.f32 %v758, %v798
    %v822 = vxor.u32 %v820, 2147483648
    %v823 = vxor.u32 %v821, 2147483648
    %v824 = vmul.f32 %v822, 1.442695
    %v825 = vpow.pop %v824
    %v826 = vmul.f32 %v823, 1.442695
    %v827 = vpow.pop %v826
    %v828 = vadd.f32 %v825, 1.0
    %v829 = vadd.f32 %v827, 1.0
    %v830 = vrcp.pop %v828
    %v831 = vmul.f32 %v828, %v830
    %v832 = vsub.f32 1.0, %v831
    %v833 = vmul.f32 %v830, %v832
    %v834 = vadd.f32 %v830, %v833
    %vm835 = vweird.f32 %v828
    %vm836 = vweird.f32 %v830
    %vm837 = vmor %vm835, %vm836
    %v838 = vsel %vm837, %v830, %v834
    %v839 = vand.u32 2147483647, %v828
    %vm840 = vcmp.eq.f32.partialorder %v839, 8.507059e+37
    %v841 = vand.u32 %v828, 2147483648
    %v842 = vor.u32 1.1754944e-38, %v841
    %v843 = vsel %vm840, %v842, %v838
    %v844 = vmul.f32 1.0, %v843
    %v845 = vrcp.pop %v829
    %v846 = vmul.f32 %v829, %v845
    %v847 = vsub.f32 1.0, %v846
    %v848 = vmul.f32 %v845, %v847
    %v849 = vadd.f32 %v845, %v848
    %vm850 = vweird.f32 %v829
    %vm851 = vweird.f32 %v845
    %vm852 = vmor %vm850, %vm851
    %v853 = vsel %vm852, %v845, %v849
    %v854 = vand.u32 2147483647, %v829
    %vm855 = vcmp.eq.f32.partialorder %v854, 8.507059e+37
    %v856 = vand.u32 %v829, 2147483648
    %v857 = vor.u32 1.1754944e-38, %v856
    %v858 = vsel %vm855, %v857, %v853
    %v859 = vmul.f32 1.0, %v858
    %v860 = vadd.f32 %v818, %v418
    %v861 = vmul.f32 %v844, %v860
    %v862 = vadd.f32 %v759, %v861
    %v863 = vtanh.pop %v862
    %v864 = vsub.f32 %v756, %v863
    %v865 = vmul.f32 %v859, %v864
    %v866 = vadd.f32 %v863, %v865
    %v867 = vld [vmem:[#allocation2 + $0x78] sm:$0xff]
    %v868 = vld [vmem:[#allocation2 + $0x80] sm:$0xff]
    %v869 = vld [vmem:[#allocation2 + $0x88] sm:$0xff]
    %870 = vmatpush.msra.mxu0 %v310
    %871 = vmatpush.msra.mxu0 %v307
    %872 = vmatpush.msra.mxu0 %v304
    %873 = vmatpush.msra.mxu0 %v301
    %874 = vmatpush.msra.mxu0 %v298
    %875 = vmatpush.msra.mxu0 %v295
    %876 = vmatpush.msra.mxu0 %v292
    %877 = vmatpush.msra.mxu0 %v289
    %878 = vmatpush.msra.mxu0 %v286
    %879 = vmatpush.msra.mxu0 %v283
    %880 = vmatpush.msra.mxu0 %v280
    %881 = vmatpush.msra.mxu0 %v277
    %882 = vmatpush.msra.mxu0 %v274
    %883 = vmatpush.msra.mxu0 %v271
    %884 = vmatpush.msra.mxu0 %v268
    %885 = vmatpush.msra.mxu0 %v265
    %886 = vmatmul.f32.gmra.mxu0 %v866
    %v887 = vpop.f32.mrf.mxu0
    %v888 = vadd.f32 0.0, %v887
    %889 = vdwg.mxu0
    %890 = vmatpush.msra.mxu0 %v311
    %891 = vmatpush.msra.mxu0 %v308
    %892 = vmatpush.msra.mxu0 %v305
    %893 = vmatpush.msra.mxu0 %v302
    %894 = vmatpush.msra.mxu0 %v299
    %895 = vmatpush.msra.mxu0 %v296
    %896 = vmatpush.msra.mxu0 %v293
    %897 = vmatpush.msra.mxu0 %v290
    %898 = vmatpush.msra.mxu0 %v287
    %899 = vmatpush.msra.mxu0 %v284
    %900 = vmatpush.msra.mxu0 %v281
    %901 = vmatpush.msra.mxu0 %v278
    %902 = vmatpush.msra.mxu0 %v275
    %903 = vmatpush.msra.mxu0 %v272
    %904 = vmatpush.msra.mxu0 %v269
    %905 = vmatpush.msra.mxu0 %v266
    %906 = vmatmul.f32.gmra.mxu0 %v866
    %v907 = vpop.f32.mrf.mxu0
    %v908 = vadd.f32 0.0, %v907
    %909 = vdwg.mxu0
    %910 = vmatpush.msra.mxu0 %v312
    %911 = vmatpush.msra.mxu0 %v309
    %912 = vmatpush.msra.mxu0 %v306
    %913 = vmatpush.msra.mxu0 %v303
    %914 = vmatpush.msra.mxu0 %v300
    %915 = vmatpush.msra.mxu0 %v297
    %916 = vmatpush.msra.mxu0 %v294
    %917 = vmatpush.msra.mxu0 %v291
    %918 = vmatpush.msra.mxu0 %v288
    %919 = vmatpush.msra.mxu0 %v285
    %920 = vmatpush.msra.mxu0 %v282
    %921 = vmatpush.msra.mxu0 %v279
    %922 = vmatpush.msra.mxu0 %v276
    %923 = vmatpush.msra.mxu0 %v273
    %924 = vmatpush.msra.mxu0 %v270
    %925 = vmatpush.msra.mxu0 %v267
    %926 = vmatmul.f32.gmra.mxu0 %v866
    %v927 = vpop.f32.mrf.mxu0
    %v928 = vadd.f32 0.0, %v927
    %929 = vdwg.mxu0
    %v930 = vadd.f32 %v867, %v888
    %v931 = vadd.f32 %v868, %v908
    %v932 = vxor.u32 %v930, 2147483648
    %v933 = vxor.u32 %v931, 2147483648
    %v934 = vmul.f32 %v932, 1.442695
    %v935 = vpow.pop %v934
    %v936 = vmul.f32 %v933, 1.442695
    %v937 = vpow.pop %v936
    %v938 = vadd.f32 %v935, 1.0
    %v939 = vadd.f32 %v937, 1.0
    %v940 = vrcp.pop %v938
    %v941 = vmul.f32 %v938, %v940
    %v942 = vsub.f32 1.0, %v941
    %v943 = vmul.f32 %v940, %v942
    %v944 = vadd.f32 %v940, %v943
    %vm945 = vweird.f32 %v938
    %vm946 = vweird.f32 %v940
    %vm947 = vmor %vm945, %vm946
    %v948 = vsel %vm947, %v940, %v944
    %v949 = vand.u32 2147483647, %v938
    %vm950 = vcmp.eq.f32.partialorder %v949, 8.507059e+37
    %v951 = vand.u32 %v938, 2147483648
    %v952 = vor.u32 1.1754944e-38, %v951
    %v953 = vsel %vm950, %v952, %v948
    %v954 = vmul.f32 1.0, %v953
    %v955 = vrcp.pop %v939
    %v956 = vmul.f32 %v939, %v955
    %v957 = vsub.f32 1.0, %v956
    %v958 = vmul.f32 %v955, %v957
    %v959 = vadd.f32 %v955, %v958
    %vm960 = vweird.f32 %v939
    %vm961 = vweird.f32 %v955
    %vm962 = vmor %vm960, %vm961
    %v963 = vsel %vm962, %v955, %v959
    %v964 = vand.u32 2147483647, %v939
    %vm965 = vcmp.eq.f32.partialorder %v964, 8.507059e+37
    %v966 = vand.u32 %v939, 2147483648
    %v967 = vor.u32 1.1754944e-38, %v966
    %v968 = vsel %vm965, %v967, %v963
    %v969 = vmul.f32 1.0, %v968
    %v970 = vadd.f32 %v928, %v418
    %v971 = vmul.f32 %v954, %v970
    %v972 = vadd.f32 %v869, %v971
    %v973 = vtanh.pop %v972
    %v974 = vsub.f32 %v866, %v973
    %v975 = vmul.f32 %v969, %v974
    %v976 = vadd.f32 %v973, %v975
    %v977 = vld [vmem:[#allocation2 + $0x90] sm:$0xff]
    %v978 = vld [vmem:[#allocation2 + $0x98] sm:$0xff]
    %v979 = vld [vmem:[#allocation2 + $0xa0] sm:$0xff]
    %980 = vmatpush.msra.mxu0 %v310
    %981 = vmatpush.msra.mxu0 %v307
    %982 = vmatpush.msra.mxu0 %v304
    %983 = vmatpush.msra.mxu0 %v301
    %984 = vmatpush.msra.mxu0 %v298
    %985 = vmatpush.msra.mxu0 %v295
    %986 = vmatpush.msra.mxu0 %v292
    %987 = vmatpush.msra.mxu0 %v289
    %988 = vmatpush.msra.mxu0 %v286
    %989 = vmatpush.msra.mxu0 %v283
    %990 = vmatpush.msra.mxu0 %v280
    %991 = vmatpush.msra.mxu0 %v277
    %992 = vmatpush.msra.mxu0 %v274
    %993 = vmatpush.msra.mxu0 %v271
    %994 = vmatpush.msra.mxu0 %v268
    %995 = vmatpush.msra.mxu0 %v265
    %996 = vmatmul.f32.gmra.mxu0 %v976
    %v997 = vpop.f32.mrf.mxu0
    %v998 = vadd.f32 0.0, %v997
    %999 = vdwg.mxu0
    %1000 = vmatpush.msra.mxu0 %v311
    %1001 = vmatpush.msra.mxu0 %v308
    %1002 = vmatpush.msra.mxu0 %v305
    %1003 = vmatpush.msra.mxu0 %v302
    %1004 = vmatpush.msra.mxu0 %v299
    %1005 = vmatpush.msra.mxu0 %v296
    %1006 = vmatpush.msra.mxu0 %v293
    %1007 = vmatpush.msra.mxu0 %v290
    %1008 = vmatpush.msra.mxu0 %v287
    %1009 = vmatpush.msra.mxu0 %v284
    %1010 = vmatpush.msra.mxu0 %v281
    %1011 = vmatpush.msra.mxu0 %v278
    %1012 = vmatpush.msra.mxu0 %v275
    %1013 = vmatpush.msra.mxu0 %v272
    %1014 = vmatpush.msra.mxu0 %v269
    %1015 = vmatpush.msra.mxu0 %v266
    %1016 = vmatmul.f32.gmra.mxu0 %v976
    %v1017 = vpop.f32.mrf.mxu0
    %v1018 = vadd.f32 0.0, %v1017
    %1019 = vdwg.mxu0
    %1020 = vmatpush.msra.mxu0 %v312
    %1021 = vmatpush.msra.mxu0 %v309
    %1022 = vmatpush.msra.mxu0 %v306
    %1023 = vmatpush.msra.mxu0 %v303
    %1024 = vmatpush.msra.mxu0 %v300
    %1025 = vmatpush.msra.mxu0 %v297
    %1026 = vmatpush.msra.mxu0 %v294
    %1027 = vmatpush.msra.mxu0 %v291
    %1028 = vmatpush.msra.mxu0 %v288
    %1029 = vmatpush.msra.mxu0 %v285
    %1030 = vmatpush.msra.mxu0 %v282
    %1031 = vmatpush.msra.mxu0 %v279
    %1032 = vmatpush.msra.mxu0 %v276
    %1033 = vmatpush.msra.mxu0 %v273
    %1034 = vmatpush.msra.mxu0 %v270
    %1035 = vmatpush.msra.mxu0 %v267
    %1036 = vmatmul.f32.gmra.mxu0 %v976
    %v1037 = vpop.f32.mrf.mxu0
    %v1038 = vadd.f32 0.0, %v1037
    %1039 = vdwg.mxu0
    %v1040 = vadd.f32 %v977, %v998
    %v1041 = vadd.f32 %v978, %v1018
    %v1042 = vxor.u32 %v1040, 2147483648
    %v1043 = vxor.u32 %v1041, 2147483648
    %v1044 = vmul.f32 %v1042, 1.442695
    %v1045 = vpow.pop %v1044
    %v1046 = vmul.f32 %v1043, 1.442695
    %v1047 = vpow.pop %v1046
    %v1048 = vadd.f32 %v1045, 1.0
    %v1049 = vadd.f32 %v1047, 1.0
    %v1050 = vrcp.pop %v1048
    %v1051 = vmul.f32 %v1048, %v1050
    %v1052 = vsub.f32 1.0, %v1051
    %v1053 = vmul.f32 %v1050, %v1052
    %v1054 = vadd.f32 %v1050, %v1053
    %vm1055 = vweird.f32 %v1048
    %vm1056 = vweird.f32 %v1050
    %vm1057 = vmor %vm1055, %vm1056
    %v1058 = vsel %vm1057, %v1050, %v1054
    %v1059 = vand.u32 2147483647, %v1048
    %vm1060 = vcmp.eq.f32.partialorder %v1059, 8.507059e+37
    %v1061 = vand.u32 %v1048, 2147483648
    %v1062 = vor.u32 1.1754944e-38, %v1061
    %v1063 = vsel %vm1060, %v1062, %v1058
    %v1064 = vmul.f32 1.0, %v1063
    %v1065 = vrcp.pop %v1049
    %v1066 = vmul.f32 %v1049, %v1065
    %v1067 = vsub.f32 1.0, %v1066
    %v1068 = vmul.f32 %v1065, %v1067
    %v1069 = vadd.f32 %v1065, %v1068
    %vm1070 = vweird.f32 %v1049
    %vm1071 = vweird.f32 %v1065
    %vm1072 = vmor %vm1070, %vm1071
    %v1073 = vsel %vm1072, %v1065, %v1069
    %v1074 = vand.u32 2147483647, %v1049
    %vm1075 = vcmp.eq.f32.partialorder %v1074, 8.507059e+37
    %v1076 = vand.u32 %v1049, 2147483648
    %v1077 = vor.u32 1.1754944e-38, %v1076
    %v1078 = vsel %vm1075, %v1077, %v1073
    %v1079 = vmul.f32 1.0, %v1078
    %v1080 = vadd.f32 %v1038, %v418
    %v1081 = vmul.f32 %v1064, %v1080
    %v1082 = vadd.f32 %v979, %v1081
    %v1083 = vtanh.pop %v1082
    %v1084 = vsub.f32 %v976, %v1083
    %v1085 = vmul.f32 %v1079, %v1084
    %v1086 = vadd.f32 %v1083, %v1085
    %v1087 = vld [vmem:[#allocation2 + $0xa8] sm:$0xff]
    %v1088 = vld [vmem:[#allocation2 + $0xb0] sm:$0xff]
    %v1089 = vld [vmem:[#allocation2 + $0xb8] sm:$0xff]
    %1090 = vmatpush.msra.mxu0 %v310
    %1091 = vmatpush.msra.mxu0 %v307
    %1092 = vmatpush.msra.mxu0 %v304
    %1093 = vmatpush.msra.mxu0 %v301
    %1094 = vmatpush.msra.mxu0 %v298
    %1095 = vmatpush.msra.mxu0 %v295
    %1096 = vmatpush.msra.mxu0 %v292
    %1097 = vmatpush.msra.mxu0 %v289
    %1098 = vmatpush.msra.mxu0 %v286
    %1099 = vmatpush.msra.mxu0 %v283
    %1100 = vmatpush.msra.mxu0 %v280
    %1101 = vmatpush.msra.mxu0 %v277
    %1102 = vmatpush.msra.mxu0 %v274
    %1103 = vmatpush.msra.mxu0 %v271
    %1104 = vmatpush.msra.mxu0 %v268
    %1105 = vmatpush.msra.mxu0 %v265
    %1106 = vmatmul.f32.gmra.mxu0 %v1086
    %v1107 = vpop.f32.mrf.mxu0
    %v1108 = vadd.f32 0.0, %v1107
    %1109 = vdwg.mxu0
    %1110 = vmatpush.msra.mxu0 %v311
    %1111 = vmatpush.msra.mxu0 %v308
    %1112 = vmatpush.msra.mxu0 %v305
    %1113 = vmatpush.msra.mxu0 %v302
    %1114 = vmatpush.msra.mxu0 %v299
    %1115 = vmatpush.msra.mxu0 %v296
    %1116 = vmatpush.msra.mxu0 %v293
    %1117 = vmatpush.msra.mxu0 %v290
    %1118 = vmatpush.msra.mxu0 %v287
    %1119 = vmatpush.msra.mxu0 %v284
    %1120 = vmatpush.msra.mxu0 %v281
    %1121 = vmatpush.msra.mxu0 %v278
    %1122 = vmatpush.msra.mxu0 %v275
    %1123 = vmatpush.msra.mxu0 %v272
    %1124 = vmatpush.msra.mxu0 %v269
    %1125 = vmatpush.msra.mxu0 %v266
    %1126 = vmatmul.f32.gmra.mxu0 %v1086
    %v1127 = vpop.f32.mrf.mxu0
    %v1128 = vadd.f32 0.0, %v1127
    %1129 = vdwg.mxu0
    %1130 = vmatpush.msra.mxu0 %v312
    %1131 = vmatpush.msra.mxu0 %v309
    %1132 = vmatpush.msra.mxu0 %v306
    %1133 = vmatpush.msra.mxu0 %v303
    %1134 = vmatpush.msra.mxu0 %v300
    %1135 = vmatpush.msra.mxu0 %v297
    %1136 = vmatpush.msra.mxu0 %v294
    %1137 = vmatpush.msra.mxu0 %v291
    %1138 = vmatpush.msra.mxu0 %v288
    %1139 = vmatpush.msra.mxu0 %v285
    %1140 = vmatpush.msra.mxu0 %v282
    %1141 = vmatpush.msra.mxu0 %v279
    %1142 = vmatpush.msra.mxu0 %v276
    %1143 = vmatpush.msra.mxu0 %v273
    %1144 = vmatpush.msra.mxu0 %v270
    %1145 = vmatpush.msra.mxu0 %v267
    %1146 = vmatmul.f32.gmra.mxu0 %v1086
    %v1147 = vpop.f32.mrf.mxu0
    %v1148 = vadd.f32 0.0, %v1147
    %1149 = vdwg.mxu0
    %v1150 = vadd.f32 %v1087, %v1108
    %v1151 = vadd.f32 %v1088, %v1128
    %v1152 = vxor.u32 %v1150, 2147483648
    %v1153 = vxor.u32 %v1151, 2147483648
    %v1154 = vmul.f32 %v1152, 1.442695
    %v1155 = vpow.pop %v1154
    %v1156 = vmul.f32 %v1153, 1.442695
    %v1157 = vpow.pop %v1156
    %v1158 = vadd.f32 %v1155, 1.0
    %v1159 = vadd.f32 %v1157, 1.0
    %v1160 = vrcp.pop %v1158
    %v1161 = vmul.f32 %v1158, %v1160
    %v1162 = vsub.f32 1.0, %v1161
    %v1163 = vmul.f32 %v1160, %v1162
    %v1164 = vadd.f32 %v1160, %v1163
    %vm1165 = vweird.f32 %v1158
    %vm1166 = vweird.f32 %v1160
    %vm1167 = vmor %vm1165, %vm1166
    %v1168 = vsel %vm1167, %v1160, %v1164
    %v1169 = vand.u32 2147483647, %v1158
    %vm1170 = vcmp.eq.f32.partialorder %v1169, 8.507059e+37
    %v1171 = vand.u32 %v1158, 2147483648
    %v1172 = vor.u32 1.1754944e-38, %v1171
    %v1173 = vsel %vm1170, %v1172, %v1168
    %v1174 = vmul.f32 1.0, %v1173
    %v1175 = vrcp.pop %v1159
    %v1176 = vmul.f32 %v1159, %v1175
    %v1177 = vsub.f32 1.0, %v1176
    %v1178 = vmul.f32 %v1175, %v1177
    %v1179 = vadd.f32 %v1175, %v1178
    %vm1180 = vweird.f32 %v1159
    %vm1181 = vweird.f32 %v1175
    %vm1182 = vmor %vm1180, %vm1181
    %v1183 = vsel %vm1182, %v1175, %v1179
    %v1184 = vand.u32 2147483647, %v1159
    %vm1185 = vcmp.eq.f32.partialorder %v1184, 8.507059e+37
    %v1186 = vand.u32 %v1159, 2147483648
    %v1187 = vor.u32 1.1754944e-38, %v1186
    %v1188 = vsel %vm1185, %v1187, %v1183
    %v1189 = vmul.f32 1.0, %v1188
    %v1190 = vadd.f32 %v1148, %v418
    %v1191 = vmul.f32 %v1174, %v1190
    %v1192 = vadd.f32 %v1089, %v1191
    %v1193 = vtanh.pop %v1192
    %v1194 = vsub.f32 %v1086, %v1193
    %v1195 = vmul.f32 %v1189, %v1194
    %v1196 = vadd.f32 %v1193, %v1195
    %v1197 = vld [vmem:[#allocation5] sm:$0xff]
    %v1198 = vld [vmem:[#allocation5 + $0x8] sm:$0xff]
    %v1199 = vld [vmem:[#allocation5 + $0x10] sm:$0xff]
    %v1200 = vld [vmem:[#allocation5 + $0x18] sm:$0xff]
    %v1201 = vld [vmem:[#allocation5 + $0x20] sm:$0xff]
    %v1202 = vld [vmem:[#allocation5 + $0x28] sm:$0xff]
    %v1203 = vld [vmem:[#allocation5 + $0x30] sm:$0xff]
    %v1204 = vld [vmem:[#allocation5 + $0x38] sm:$0xff]
    %v1205 = vld [vmem:[#allocation5 + $0x40] sm:$0xff]
    %v1206 = vld [vmem:[#allocation5 + $0x48] sm:$0xff]
    %v1207 = vld [vmem:[#allocation5 + $0x50] sm:$0xff]
    %v1208 = vld [vmem:[#allocation5 + $0x58] sm:$0xff]
    %v1209 = vld [vmem:[#allocation5 + $0x60] sm:$0xff]
    %v1210 = vld [vmem:[#allocation5 + $0x68] sm:$0xff]
    %v1211 = vld [vmem:[#allocation5 + $0x70] sm:$0xff]
    %v1212 = vld [vmem:[#allocation5 + $0x78] sm:$0xff]
    %v1213 = vld [vmem:[%s6] sm:$0x1]
    %v1215 = vperm.slane %v1213, 0
    %1217 = vmatpush.msra.mxu0 %v1212
    %1218 = vmatpush.msra.mxu0 %v1211
    %1219 = vmatpush.msra.mxu0 %v1210
    %1220 = vmatpush.msra.mxu0 %v1209
    %1221 = vmatpush.msra.mxu0 %v1208
    %1222 = vmatpush.msra.mxu0 %v1207
    %1223 = vmatpush.msra.mxu0 %v1206
    %1224 = vmatpush.msra.mxu0 %v1205
    %1225 = vmatpush.msra.mxu0 %v1204
    %1226 = vmatpush.msra.mxu0 %v1203
    %1227 = vmatpush.msra.mxu0 %v1202
    %1228 = vmatpush.msra.mxu0 %v1201
    %1229 = vmatpush.msra.mxu0 %v1200
    %1230 = vmatpush.msra.mxu0 %v1199
    %1231 = vmatpush.msra.mxu0 %v1198
    %1232 = vmatpush.msra.mxu0 %v1197
    %1233 = vmatmul.f32.gmra.mxu0 %v1196
    %v1234 = vpop.f32.mrf.mxu0
    %v1235 = vadd.f32 %v1215, %v1234
    %1236 = vdwg.mxu0
    %1237 = vst [vmem:[%s7] sm:$0xff] %v1235
    // Predicated region
    $region38: #{gruc_forward.1} parent=1 // pred_check
      _
    $region39: #{gruc_forward.1} parent=1 // pred_check_branch
      %1239 = sbr.rel (0) target = $region41
    $region40: #{gruc_forward.1} parent=1 // pred_region
      _
    $region41: #{gruc_forward.1} parent=1 // pred_fallthru
      _
    // Predicated region
    $region42: #{gruc_forward.1} parent=1 // pred_check
      _
    $region43: #{gruc_forward.1} parent=1 // pred_check_branch
      %1241 = sbr.rel (0) target = $region45
    $region44: #{gruc_forward.1} parent=1 // pred_region
      _
    $region45: #{gruc_forward.1} parent=1 // pred_fallthru
      _
    %1242 = vsyncpa [#allocation4], 1
    %1243 = vsyncpa [#allocation6], 1

</llo_original>
